<compile_context>
chip_gen: v5e
topology: v5e:2x2
jax: 0.10.0
libtpu: 0.0.40
codegen_flags: <defaults>
</compile_context>

<pallas_src>
import functools

import numpy as np
import jax
import jax.numpy as jnp
from jax import lax
from jax.experimental import pallas as pl
from jax.experimental.pallas import tpu as pltpu


# ------------------------------ Pallas kernel ------------------------------ #
def attn_prop_kernel(x_ref, src_ref,
                     wq_ref, bq_ref, wkv_ref, bkv_ref,
                     wmx_ref, wm2_ref, b2_ref,
                     o_ref,
                     q_sc, kv_sc, attn_sc,
                     *, num_heads, mxu_dtype):
    D = q_sc.shape[0]
    head_dim = D // num_heads

    # Projections for this batch element: two full-width MXU matmuls, f32 acc.
    # (Wq already carries 1/sqrt(head_dim); Wk/Wv are stacked into one weight.)
    q_sc[...] = (jnp.dot(wq_ref[...], x_ref[...],
                         preferred_element_type=jnp.float32) + bq_ref[...])
    kv_sc[...] = (jnp.dot(wkv_ref[...], src_ref[...],
                          preferred_element_type=jnp.float32) + bkv_ref[...])

    # Per-head attention (small fixed head loop kept unrolled).  Head slices of
    # the f32 scratch refs are static, 8-sublane-aligned slices; each head's
    # output is written straight into the attn scratch (bounded live ranges).
    for h in range(num_heads):
        lo = h * head_dim
        hi = lo + head_dim
        qh = q_sc[lo:hi, :].astype(mxu_dtype)             # (hd, N)
        kh = kv_sc[lo:hi, :].astype(mxu_dtype)            # (hd, M)
        vh = kv_sc[D + lo:D + hi, :].astype(mxu_dtype)    # (hd, M)

        # Transposed scores: sT[m, n] = sum_d kh[d, m] * qh[d, n]  -> (M, N).
        # Only the tiny (hd, .) operands need relayout; the big probability
        # matrix feeds the PV matmul below with no transpose.
        sT = lax.dot_general(kh, qh, (((0,), (0,)), ((), ())),
                             preferred_element_type=jnp.float32)
        sT = sT - jnp.max(sT, axis=0, keepdims=True)
        # NOTE: on v6e/v7x the exp could be done in bf16 if the EUP ever
        # becomes the binding slot (not on v5e: f32-only EUP).
        p = jnp.exp(sT)                                   # unnormalized (M, N)
        l = jnp.sum(p, axis=0, keepdims=True)             # (1, N)

        # Canonical (hd, M) x (M, N) matmul -- p is consumed untransposed.
        oh = lax.dot_general(vh, p.astype(mxu_dtype), (((1,), (0,)), ((), ())),
                             preferred_element_type=jnp.float32)   # (hd, N)
        # Normalize after the PV matmul: hd*N multiplies + one EUP reciprocal
        # per column instead of M*N VALU divides.
        attn_sc[lo:hi, :] = oh * pl.reciprocal(l, approx=True)

    # Final MLP with the merge conv fused in on the host:
    #   out = Wmlp_x @ x + (Wmlp_m @ Wm) @ attn + Wmlp_m @ bm
    out = (jnp.dot(wmx_ref[...], x_ref[...], preferred_element_type=jnp.float32)
           + jnp.dot(wm2_ref[...], attn_sc[...].astype(mxu_dtype),
                     preferred_element_type=jnp.float32)
           + b2_ref[...])
    o_ref[...] = out.astype(o_ref.dtype)


# -------------------------------- wrapper ----------------------------------- #
def _vmem_bytes_estimate(D, N, M, mxu_bytes):
    """Rough per-grid-step VMEM footprint (double-buffered I/O + weights +
    scratch + live intermediates)."""
    f32 = 4
    io_blocks = 2 * (D * N * mxu_bytes + D * M * mxu_bytes + D * N * f32)
    weights = 5 * D * D * mxu_bytes + 4 * D * f32          # Wq, Wkv, Wmlp_x, W_m2 + biases
    scratch = (2 * D * N + 2 * D * M) * f32                # q, kv, attn
    live = 2 * M * N * f32 + 2 * D * N * f32               # score/prob tile + temporaries
    return io_blocks + weights + scratch + live


def attentional_propagation_pallas(x, source, params, num_heads,
                                   compute_dtype=jnp.bfloat16):
    """x: (B, D, N), source: (B, D, M).
    params = (Wq, bq, Wk, bk, Wv, bv, Wm, bm, Wmlp) in PyTorch Conv1d layout."""
    B, D, N = x.shape
    M = source.shape[2]
    head_dim = D // num_heads
    assert head_dim * num_heads == D

    Wq, bq, Wk, bk, Wv, bv, Wm, bm, Wmlp = params
    hi_prec = jax.lax.Precision.HIGHEST

    # Head-major channel permutation: new row (h*head_dim + d) <- old (d*H + h).
    head_major = np.array([d * num_heads + h
                           for h in range(num_heads) for d in range(head_dim)],
                          dtype=np.int32)
    scale = 1.0 / float(np.sqrt(head_dim))

    Wq_p = Wq[head_major, :] * scale                 # attention scale folded into q proj
    bq_p = (bq[head_major] * scale).reshape(D, 1)
    Wkv_p = jnp.concatenate([Wk[head_major, :], Wv[head_major, :]], axis=0)   # (2D, D)
    bkv_p = jnp.concatenate([bk[head_major], bv[head_major]]).reshape(2 * D, 1)
    Wm_c = Wm[:, head_major]                         # columns consume head-major attn
    Wmlp_x = Wmlp[:, :D]
    Wmlp_m = Wmlp[:, D:]
    # Fuse merge conv into the final MLP (exact f32 on host).
    W_m2 = jnp.dot(Wmlp_m, Wm_c, precision=hi_prec)                 # (D, D)
    b_m2 = jnp.dot(Wmlp_m, bm.reshape(D, 1), precision=hi_prec)     # (D, 1)

    # bf16 operands for the MXU (halves DMA volume / VMEM); biases stay f32.
    x_c = x.astype(compute_dtype)
    s_c = source.astype(compute_dtype)
    Wq_c = Wq_p.astype(compute_dtype)
    Wkv_c = Wkv_p.astype(compute_dtype)
    Wmx_c = Wmlp_x.astype(compute_dtype)
    Wm2_c = W_m2.astype(compute_dtype)
    bq_f = bq_p.astype(jnp.float32)
    bkv_f = bkv_p.astype(jnp.float32)
    b2_f = b_m2.astype(jnp.float32)

    kernel = functools.partial(attn_prop_kernel, num_heads=num_heads,
                               mxu_dtype=compute_dtype)

    full2 = lambda b: (0, 0)
    grid_spec = pltpu.PrefetchScalarGridSpec(
        num_scalar_prefetch=0,
        grid=(B,),
        in_specs=[
            pl.BlockSpec((None, D, N), lambda b: (b, 0, 0)),      # x[b]     (D, N)
            pl.BlockSpec((None, D, M), lambda b: (b, 0, 0)),      # source[b](D, M)
            pl.BlockSpec((D, D), full2), pl.BlockSpec((D, 1), full2),          # Wq, bq
            pl.BlockSpec((2 * D, D), full2), pl.BlockSpec((2 * D, 1), full2),  # Wkv, bkv
            pl.BlockSpec((D, D), full2),                                       # Wmlp_x
            pl.BlockSpec((D, D), full2),                                       # W_m2
            pl.BlockSpec((D, 1), full2),                                       # b_m2
        ],
        out_specs=pl.BlockSpec((None, D, N), lambda b: (b, 0, 0)),
        scratch_shapes=[
            pltpu.VMEM((D, N), jnp.float32),       # q   (head-major)
            pltpu.VMEM((2 * D, M), jnp.float32),   # k | v stacked
            pltpu.VMEM((D, N), jnp.float32),       # attn (head-major)
        ],
    )

    cp_kwargs = dict(dimension_semantics=("parallel",))
    est = _vmem_bytes_estimate(D, N, M, jnp.dtype(compute_dtype).itemsize)
    if est > 16 * 1024 * 1024:     # above the smallest (v5e) scoped default
        # Leave headroom below v7x's 64 MiB physical VMEM (128 MiB on v5e/v6e).
        cp_kwargs["vmem_limit_bytes"] = min(int(est * 3 // 2), 56 * 1024 * 1024)
    # For shapes where `est` approaches v7x's 64 MiB, add a second grid axis
    # tiling N (queries): softmax is over M, so N-tiling needs no re-normalize.

    return pl.pallas_call(
        kernel,
        out_shape=jax.ShapeDtypeStruct((B, D, N), jnp.float32),
        grid_spec=grid_spec,
        compiler_params=pltpu.CompilerParams(**cp_kwargs),
    )(x_c, s_c, Wq_c, bq_f, Wkv_c, bkv_f, Wmx_c, Wm2_c, b2_f)


# --------------------------- pure-JAX f32 reference ------------------------- #
def reference_forward(x, source, Wq, bq, Wk, bk, Wv, bv, Wm, bm, Wmlp, num_heads):
    B, D, N = x.shape
    M = source.shape[2]
    hd = D // num_heads
    P = jax.lax.Precision.HIGHEST

    def conv1x1(inp, W, b=None):
        out = jnp.einsum('oc,bcn->bon', W, inp, precision=P)
        if b is not None:
            out = out + b[None, :, None]
        return out

    q = conv1x1(x, Wq, bq).reshape(B, hd, num_heads, N)
    k = conv1x1(source, Wk, bk).reshape(B, hd, num_heads, M)
    v = conv1x1(source, Wv, bv).reshape(B, hd, num_heads, M)
    scores = jnp.einsum('bdhn,bdhm->bhnm', q, k, precision=P) / (hd ** 0.5)
    prob = jax.nn.softmax(scores, axis=-1)
    attn = jnp.einsum('bhnm,bdhm->bdhn', prob, v, precision=P).reshape(B, D, N)
    message = conv1x1(attn, Wm, bm)
    cat = jnp.concatenate([x, message], axis=1)                 # (B, 2D, N)
    return conv1x1(cat, Wmlp)                                   # MLP([2D, D]), bias=False


# ------------------------------------ main ----------------------------------- #
if __name__ == "__main__":
    B, D, N, M, H = 2, 32, 16, 16, 4    # batch, feature_dim, n_query, n_source, heads

    key = jax.random.PRNGKey(0)
    ks = jax.random.split(key, 12)
    sc = 1.0 / np.sqrt(D)

    x = jax.random.normal(ks[0], (B, D, N), jnp.float32)
    source = jax.random.normal(ks[1], (B, D, M), jnp.float32)

    Wq = jax.random.normal(ks[2], (D, D), jnp.float32) * sc
    bq = jax.random.normal(ks[3], (D,), jnp.float32) * 0.1
    Wk = jax.random.normal(ks[4], (D, D), jnp.float32) * sc
    bk = jax.random.normal(ks[5], (D,), jnp.float32) * 0.1
    Wv = jax.random.normal(ks[6], (D, D), jnp.float32) * sc
    bv = jax.random.normal(ks[7], (D,), jnp.float32) * 0.1
    Wm = jax.random.normal(ks[8], (D, D), jnp.float32) * sc
    bm = jax.random.normal(ks[9], (D,), jnp.float32) * 0.1
    Wmlp = jax.random.normal(ks[10], (D, 2 * D), jnp.float32) * (1.0 / np.sqrt(2 * D))

    params = (Wq, bq, Wk, bk, Wv, bv, Wm, bm, Wmlp)
    ref = jax.block_until_ready(
        reference_forward(x, source, Wq, bq, Wk, bk, Wv, bv, Wm, bm, Wmlp, H))

    # 1) f32 compute path: tight structural check (tolerance only absorbs the
    #    approx EUP reciprocal and f32 MXU rounding).
    out_f32 = jax.block_until_ready(
        attentional_propagation_pallas(x, source, params, num_heads=H,
                                       compute_dtype=jnp.float32))
    np.testing.assert_allclose(np.asarray(out_f32), np.asarray(ref),
                               rtol=2e-3, atol=2e-3)

    # 2) default bf16 MXU path (per perf review): looser tolerance for bf16
    #    rounding; still far below the O(1) errors a structural bug would give.
    out_bf16 = jax.block_until_ready(
        attentional_propagation_pallas(x, source, params, num_heads=H))
    np.testing.assert_allclose(np.asarray(out_bf16), np.asarray(ref),
                               rtol=5e-2, atol=5e-2)

    print("KERNEL_OK")
</pallas_src>

<mosaic_0001>
module attributes {stable_mosaic.version = 11 : i64} {
  func.func @attn_prop_kernel(%arg0: i32, %arg1: memref<1x32x16xf32, #tpu.memory_space<vmem>>, %arg2: memref<1x32x16xf32, #tpu.memory_space<vmem>>, %arg3: memref<32x32xf32, #tpu.memory_space<vmem>>, %arg4: memref<32x1xf32, #tpu.memory_space<vmem>>, %arg5: memref<64x32xf32, #tpu.memory_space<vmem>>, %arg6: memref<64x1xf32, #tpu.memory_space<vmem>>, %arg7: memref<32x32xf32, #tpu.memory_space<vmem>>, %arg8: memref<32x32xf32, #tpu.memory_space<vmem>>, %arg9: memref<32x1xf32, #tpu.memory_space<vmem>>, %arg10: memref<1x32x16xf32, #tpu.memory_space<vmem>>, %arg11: memref<32x16xf32, #tpu.memory_space<vmem>>, %arg12: memref<64x16xf32, #tpu.memory_space<vmem>>, %arg13: memref<32x16xf32, #tpu.memory_space<vmem>>) attributes {dimension_semantics = [#tpu.dimension_semantics<parallel>], iteration_bounds = array<i64: 2>, scalar_prefetch = 0 : i64, scratch_operands = 3 : i64, tpu.core_type = #tpu.core_type<tc>, window_params = [{transform_indices = @transform_0, window_bounds = array<i64: 1, 32, 16>}, {transform_indices = @transform_1, window_bounds = array<i64: 1, 32, 16>}, {pipeline_mode = #tpu.pipeline_mode<synchronous>, transform_indices = @transform_2, window_bounds = array<i64: 32, 32>}, {pipeline_mode = #tpu.pipeline_mode<synchronous>, transform_indices = @transform_3, window_bounds = array<i64: 32, 1>}, {pipeline_mode = #tpu.pipeline_mode<synchronous>, transform_indices = @transform_4, window_bounds = array<i64: 64, 32>}, {pipeline_mode = #tpu.pipeline_mode<synchronous>, transform_indices = @transform_5, window_bounds = array<i64: 64, 1>}, {pipeline_mode = #tpu.pipeline_mode<synchronous>, transform_indices = @transform_6, window_bounds = array<i64: 32, 32>}, {pipeline_mode = #tpu.pipeline_mode<synchronous>, transform_indices = @transform_7, window_bounds = array<i64: 32, 32>}, {pipeline_mode = #tpu.pipeline_mode<synchronous>, transform_indices = @transform_8, window_bounds = array<i64: 32, 1>}, {transform_indices = @transform_9, window_bounds = array<i64: 1, 32, 16>}]} {
    %c0 = arith.constant 0 : index
    %c0_0 = arith.constant 0 : index
    %0 = vector.load %arg3[%c0, %c0_0] : memref<32x32xf32, #tpu.memory_space<vmem>>, vector<32x32xf32>
    %c0_1 = arith.constant 0 : index
    %c0_2 = arith.constant 0 : index
    %c0_3 = arith.constant 0 : index
    %1 = vector.load %arg1[%c0_1, %c0_2, %c0_3] : memref<1x32x16xf32, #tpu.memory_space<vmem>>, vector<1x32x16xf32>
    %2 = vector.shape_cast %1 : vector<1x32x16xf32> to vector<32x16xf32>
    %cst = arith.constant dense<0.000000e+00> : vector<32x16xf32>
    %3 = tpu.matmul %0, %2, %cst {dimension_numbers = #tpu.dot_dimension_numbers<[1], [0], [0], [1], [0, 0, 1, 1], [], []>} : vector<32x32xf32>, vector<32x16xf32>, vector<32x16xf32> -> vector<32x16xf32>
    %c0_4 = arith.constant 0 : index
    %c0_5 = arith.constant 0 : index
    %4 = vector.load %arg4[%c0_4, %c0_5] : memref<32x1xf32, #tpu.memory_space<vmem>>, vector<32x1xf32>
    %5 = vector.broadcast %4 : vector<32x1xf32> to vector<32x16xf32>
    %6 = arith.addf %3, %5 : vector<32x16xf32>
    %c0_6 = arith.constant 0 : index
    %c0_7 = arith.constant 0 : index
    %7 = vector.load %arg11[%c0_6, %c0_7] : memref<32x16xf32, #tpu.memory_space<vmem>>, vector<32x16xf32>
    tpu.vector_store %arg11[%c0_6, %c0_7], %6 {strides = array<i32>} : memref<32x16xf32, #tpu.memory_space<vmem>>, vector<32x16xf32>,
    %c0_8 = arith.constant 0 : index
    %c0_9 = arith.constant 0 : index
    %8 = vector.load %arg5[%c0_8, %c0_9] : memref<64x32xf32, #tpu.memory_space<vmem>>, vector<64x32xf32>
    %c0_10 = arith.constant 0 : index
    %c0_11 = arith.constant 0 : index
    %c0_12 = arith.constant 0 : index
    %9 = vector.load %arg2[%c0_10, %c0_11, %c0_12] : memref<1x32x16xf32, #tpu.memory_space<vmem>>, vector<1x32x16xf32>
    %10 = vector.shape_cast %9 : vector<1x32x16xf32> to vector<32x16xf32>
    %cst_13 = arith.constant dense<0.000000e+00> : vector<64x16xf32>
    %11 = tpu.matmul %8, %10, %cst_13 {dimension_numbers = #tpu.dot_dimension_numbers<[1], [0], [0], [1], [0, 0, 1, 1], [], []>} : vector<64x32xf32>, vector<32x16xf32>, vector<64x16xf32> -> vector<64x16xf32>
    %c0_14 = arith.constant 0 : index
    %c0_15 = arith.constant 0 : index
    %12 = vector.load %arg6[%c0_14, %c0_15] : memref<64x1xf32, #tpu.memory_space<vmem>>, vector<64x1xf32>
    %13 = vector.broadcast %12 : vector<64x1xf32> to vector<64x16xf32>
    %14 = arith.addf %11, %13 : vector<64x16xf32>
    %c0_16 = arith.constant 0 : index
    %c0_17 = arith.constant 0 : index
    %15 = vector.load %arg12[%c0_16, %c0_17] : memref<64x16xf32, #tpu.memory_space<vmem>>, vector<64x16xf32>
    tpu.vector_store %arg12[%c0_16, %c0_17], %14 {strides = array<i32>} : memref<64x16xf32, #tpu.memory_space<vmem>>, vector<64x16xf32>,
    %c0_18 = arith.constant 0 : index
    %c0_19 = arith.constant 0 : index
    %16 = vector.load %arg11[%c0_18, %c0_19] : memref<32x16xf32, #tpu.memory_space<vmem>>, vector<8x16xf32>
    %c0_20 = arith.constant 0 : index
    %c0_21 = arith.constant 0 : index
    %17 = vector.load %arg12[%c0_20, %c0_21] : memref<64x16xf32, #tpu.memory_space<vmem>>, vector<8x16xf32>
    %c32 = arith.constant 32 : index
    %c0_22 = arith.constant 0 : index
    %18 = vector.load %arg12[%c32, %c0_22] : memref<64x16xf32, #tpu.memory_space<vmem>>, vector<8x16xf32>
    %cst_23 = arith.constant dense<0.000000e+00> : vector<16x16xf32>
    %19 = tpu.matmul %17, %16, %cst_23 {dimension_numbers = #tpu.dot_dimension_numbers<[0], [0], [1], [1], [0, 1, 1, 1], [], []>} : vector<8x16xf32>, vector<8x16xf32>, vector<16x16xf32> -> vector<16x16xf32>
    %cst_24 = arith.constant dense<0xFF800000> : vector<16xf32>
    %20 = vector.multi_reduction <maximumf>, %19, %cst_24 [0] : vector<16x16xf32> to vector<16xf32>
    %21 = vector.shape_cast %20 : vector<16xf32> to vector<1x16xf32>
    %22 = vector.broadcast %21 : vector<1x16xf32> to vector<16x16xf32>
    %23 = arith.subf %19, %22 : vector<16x16xf32>
    %24 = math.exp %23 : vector<16x16xf32>
    %cst_25 = arith.constant dense<0.000000e+00> : vector<16xf32>
    %25 = vector.multi_reduction <add>, %24, %cst_25 [0] : vector<16x16xf32> to vector<16xf32>
    %26 = vector.shape_cast %25 : vector<16xf32> to vector<1x16xf32>
    %cst_26 = arith.constant dense<0.000000e+00> : vector<8x16xf32>
    %27 = tpu.matmul %18, %24, %cst_26 {dimension_numbers = #tpu.dot_dimension_numbers<[1], [0], [0], [1], [0, 0, 1, 1], [], []>} : vector<8x16xf32>, vector<16x16xf32>, vector<8x16xf32> -> vector<8x16xf32>
    %28 = tpu.reciprocal %26 {approx = true} : vector<1x16xf32> -> vector<1x16xf32>
    %29 = vector.broadcast %28 : vector<1x16xf32> to vector<8x16xf32>
    %30 = arith.mulf %27, %29 : vector<8x16xf32>
    %c0_27 = arith.constant 0 : index
    %c0_28 = arith.constant 0 : index
    %31 = vector.load %arg13[%c0_27, %c0_28] : memref<32x16xf32, #tpu.memory_space<vmem>>, vector<8x16xf32>
    tpu.vector_store %arg13[%c0_27, %c0_28], %30 {strides = array<i32>} : memref<32x16xf32, #tpu.memory_space<vmem>>, vector<8x16xf32>,
    %c8 = arith.constant 8 : index
    %c0_29 = arith.constant 0 : index
    %32 = vector.load %arg11[%c8, %c0_29] : memref<32x16xf32, #tpu.memory_space<vmem>>, vector<8x16xf32>
    %c8_30 = arith.constant 8 : index
    %c0_31 = arith.constant 0 : index
    %33 = vector.load %arg12[%c8_30, %c0_31] : memref<64x16xf32, #tpu.memory_space<vmem>>, vector<8x16xf32>
    %c40 = arith.constant 40 : index
    %c0_32 = arith.constant 0 : index
    %34 = vector.load %arg12[%c40, %c0_32] : memref<64x16xf32, #tpu.memory_space<vmem>>, vector<8x16xf32>
    %cst_33 = arith.constant dense<0.000000e+00> : vector<16x16xf32>
    %35 = tpu.matmul %33, %32, %cst_33 {dimension_numbers = #tpu.dot_dimension_numbers<[0], [0], [1], [1], [0, 1, 1, 1], [], []>} : vector<8x16xf32>, vector<8x16xf32>, vector<16x16xf32> -> vector<16x16xf32>
    %cst_34 = arith.constant dense<0xFF800000> : vector<16xf32>
    %36 = vector.multi_reduction <maximumf>, %35, %cst_34 [0] : vector<16x16xf32> to vector<16xf32>
    %37 = vector.shape_cast %36 : vector<16xf32> to vector<1x16xf32>
    %38 = vector.broadcast %37 : vector<1x16xf32> to vector<16x16xf32>
    %39 = arith.subf %35, %38 : vector<16x16xf32>
    %40 = math.exp %39 : vector<16x16xf32>
    %cst_35 = arith.constant dense<0.000000e+00> : vector<16xf32>
    %41 = vector.multi_reduction <add>, %40, %cst_35 [0] : vector<16x16xf32> to vector<16xf32>
    %42 = vector.shape_cast %41 : vector<16xf32> to vector<1x16xf32>
    %cst_36 = arith.constant dense<0.000000e+00> : vector<8x16xf32>
    %43 = tpu.matmul %34, %40, %cst_36 {dimension_numbers = #tpu.dot_dimension_numbers<[1], [0], [0], [1], [0, 0, 1, 1], [], []>} : vector<8x16xf32>, vector<16x16xf32>, vector<8x16xf32> -> vector<8x16xf32>
    %44 = tpu.reciprocal %42 {approx = true} : vector<1x16xf32> -> vector<1x16xf32>
    %45 = vector.broadcast %44 : vector<1x16xf32> to vector<8x16xf32>
    %46 = arith.mulf %43, %45 : vector<8x16xf32>
    %c8_37 = arith.constant 8 : index
    %c0_38 = arith.constant 0 : index
    %47 = vector.load %arg13[%c8_37, %c0_38] : memref<32x16xf32, #tpu.memory_space<vmem>>, vector<8x16xf32>
    tpu.vector_store %arg13[%c8_37, %c0_38], %46 {strides = array<i32>} : memref<32x16xf32, #tpu.memory_space<vmem>>, vector<8x16xf32>,
    %c16 = arith.constant 16 : index
    %c0_39 = arith.constant 0 : index
    %48 = vector.load %arg11[%c16, %c0_39] : memref<32x16xf32, #tpu.memory_space<vmem>>, vector<8x16xf32>
    %c16_40 = arith.constant 16 : index
    %c0_41 = arith.constant 0 : index
    %49 = vector.load %arg12[%c16_40, %c0_41] : memref<64x16xf32, #tpu.memory_space<vmem>>, vector<8x16xf32>
    %c48 = arith.constant 48 : index
    %c0_42 = arith.constant 0 : index
    %50 = vector.load %arg12[%c48, %c0_42] : memref<64x16xf32, #tpu.memory_space<vmem>>, vector<8x16xf32>
    %cst_43 = arith.constant dense<0.000000e+00> : vector<16x16xf32>
    %51 = tpu.matmul %49, %48, %cst_43 {dimension_numbers = #tpu.dot_dimension_numbers<[0], [0], [1], [1], [0, 1, 1, 1], [], []>} : vector<8x16xf32>, vector<8x16xf32>, vector<16x16xf32> -> vector<16x16xf32>
    %cst_44 = arith.constant dense<0xFF800000> : vector<16xf32>
    %52 = vector.multi_reduction <maximumf>, %51, %cst_44 [0] : vector<16x16xf32> to vector<16xf32>
    %53 = vector.shape_cast %52 : vector<16xf32> to vector<1x16xf32>
    %54 = vector.broadcast %53 : vector<1x16xf32> to vector<16x16xf32>
    %55 = arith.subf %51, %54 : vector<16x16xf32>
    %56 = math.exp %55 : vector<16x16xf32>
    %cst_45 = arith.constant dense<0.000000e+00> : vector<16xf32>
    %57 = vector.multi_reduction <add>, %56, %cst_45 [0] : vector<16x16xf32> to vector<16xf32>
    %58 = vector.shape_cast %57 : vector<16xf32> to vector<1x16xf32>
    %cst_46 = arith.constant dense<0.000000e+00> : vector<8x16xf32>
    %59 = tpu.matmul %50, %56, %cst_46 {dimension_numbers = #tpu.dot_dimension_numbers<[1], [0], [0], [1], [0, 0, 1, 1], [], []>} : vector<8x16xf32>, vector<16x16xf32>, vector<8x16xf32> -> vector<8x16xf32>
    %60 = tpu.reciprocal %58 {approx = true} : vector<1x16xf32> -> vector<1x16xf32>
    %61 = vector.broadcast %60 : vector<1x16xf32> to vector<8x16xf32>
    %62 = arith.mulf %59, %61 : vector<8x16xf32>
    %c16_47 = arith.constant 16 : index
    %c0_48 = arith.constant 0 : index
    %63 = vector.load %arg13[%c16_47, %c0_48] : memref<32x16xf32, #tpu.memory_space<vmem>>, vector<8x16xf32>
    tpu.vector_store %arg13[%c16_47, %c0_48], %62 {strides = array<i32>} : memref<32x16xf32, #tpu.memory_space<vmem>>, vector<8x16xf32>,
    %c24 = arith.constant 24 : index
    %c0_49 = arith.constant 0 : index
    %64 = vector.load %arg11[%c24, %c0_49] : memref<32x16xf32, #tpu.memory_space<vmem>>, vector<8x16xf32>
    %c24_50 = arith.constant 24 : index
    %c0_51 = arith.constant 0 : index
    %65 = vector.load %arg12[%c24_50, %c0_51] : memref<64x16xf32, #tpu.memory_space<vmem>>, vector<8x16xf32>
    %c56 = arith.constant 56 : index
    %c0_52 = arith.constant 0 : index
    %66 = vector.load %arg12[%c56, %c0_52] : memref<64x16xf32, #tpu.memory_space<vmem>>, vector<8x16xf32>
    %cst_53 = arith.constant dense<0.000000e+00> : vector<16x16xf32>
    %67 = tpu.matmul %65, %64, %cst_53 {dimension_numbers = #tpu.dot_dimension_numbers<[0], [0], [1], [1], [0, 1, 1, 1], [], []>} : vector<8x16xf32>, vector<8x16xf32>, vector<16x16xf32> -> vector<16x16xf32>
    %cst_54 = arith.constant dense<0xFF800000> : vector<16xf32>
    %68 = vector.multi_reduction <maximumf>, %67, %cst_54 [0] : vector<16x16xf32> to vector<16xf32>
    %69 = vector.shape_cast %68 : vector<16xf32> to vector<1x16xf32>
    %70 = vector.broadcast %69 : vector<1x16xf32> to vector<16x16xf32>
    %71 = arith.subf %67, %70 : vector<16x16xf32>
    %72 = math.exp %71 : vector<16x16xf32>
    %cst_55 = arith.constant dense<0.000000e+00> : vector<16xf32>
    %73 = vector.multi_reduction <add>, %72, %cst_55 [0] : vector<16x16xf32> to vector<16xf32>
    %74 = vector.shape_cast %73 : vector<16xf32> to vector<1x16xf32>
    %cst_56 = arith.constant dense<0.000000e+00> : vector<8x16xf32>
    %75 = tpu.matmul %66, %72, %cst_56 {dimension_numbers = #tpu.dot_dimension_numbers<[1], [0], [0], [1], [0, 0, 1, 1], [], []>} : vector<8x16xf32>, vector<16x16xf32>, vector<8x16xf32> -> vector<8x16xf32>
    %76 = tpu.reciprocal %74 {approx = true} : vector<1x16xf32> -> vector<1x16xf32>
    %77 = vector.broadcast %76 : vector<1x16xf32> to vector<8x16xf32>
    %78 = arith.mulf %75, %77 : vector<8x16xf32>
    %c24_57 = arith.constant 24 : index
    %c0_58 = arith.constant 0 : index
    %79 = vector.load %arg13[%c24_57, %c0_58] : memref<32x16xf32, #tpu.memory_space<vmem>>, vector<8x16xf32>
    tpu.vector_store %arg13[%c24_57, %c0_58], %78 {strides = array<i32>} : memref<32x16xf32, #tpu.memory_space<vmem>>, vector<8x16xf32>,
    %c0_59 = arith.constant 0 : index
    %c0_60 = arith.constant 0 : index
    %80 = vector.load %arg7[%c0_59, %c0_60] : memref<32x32xf32, #tpu.memory_space<vmem>>, vector<32x32xf32>
    %c0_61 = arith.constant 0 : index
    %c0_62 = arith.constant 0 : index
    %c0_63 = arith.constant 0 : index
    %81 = vector.load %arg1[%c0_61, %c0_62, %c0_63] : memref<1x32x16xf32, #tpu.memory_space<vmem>>, vector<1x32x16xf32>
    %82 = vector.shape_cast %81 : vector<1x32x16xf32> to vector<32x16xf32>
    %cst_64 = arith.constant dense<0.000000e+00> : vector<32x16xf32>
    %83 = tpu.matmul %80, %82, %cst_64 {dimension_numbers = #tpu.dot_dimension_numbers<[1], [0], [0], [1], [0, 0, 1, 1], [], []>} : vector<32x32xf32>, vector<32x16xf32>, vector<32x16xf32> -> vector<32x16xf32>
    %c0_65 = arith.constant 0 : index
    %c0_66 = arith.constant 0 : index
    %84 = vector.load %arg8[%c0_65, %c0_66] : memref<32x32xf32, #tpu.memory_space<vmem>>, vector<32x32xf32>
    %c0_67 = arith.constant 0 : index
    %c0_68 = arith.constant 0 : index
    %85 = vector.load %arg13[%c0_67, %c0_68] : memref<32x16xf32, #tpu.memory_space<vmem>>, vector<32x16xf32>
    %cst_69 = arith.constant dense<0.000000e+00> : vector<32x16xf32>
    %86 = tpu.matmul %84, %85, %cst_69 {dimension_numbers = #tpu.dot_dimension_numbers<[1], [0], [0], [1], [0, 0, 1, 1], [], []>} : vector<32x32xf32>, vector<32x16xf32>, vector<32x16xf32> -> vector<32x16xf32>
    %87 = arith.addf %83, %86 : vector<32x16xf32>
    %c0_70 = arith.constant 0 : index
    %c0_71 = arith.constant 0 : index
    %88 = vector.load %arg9[%c0_70, %c0_71] : memref<32x1xf32, #tpu.memory_space<vmem>>, vector<32x1xf32>
    %89 = vector.broadcast %88 : vector<32x1xf32> to vector<32x16xf32>
    %90 = arith.addf %87, %89 : vector<32x16xf32>
    %c0_72 = arith.constant 0 : index
    %c0_73 = arith.constant 0 : index
    %c0_74 = arith.constant 0 : index
    %91 = vector.load %arg10[%c0_72, %c0_73, %c0_74] : memref<1x32x16xf32, #tpu.memory_space<vmem>>, vector<1x32x16xf32>
    %92 = vector.shape_cast %91 : vector<1x32x16xf32> to vector<32x16xf32>
    %93 = vector.shape_cast %90 : vector<32x16xf32> to vector<1x32x16xf32>
    tpu.vector_store %arg10[%c0_72, %c0_73, %c0_74], %93 {strides = array<i32>} : memref<1x32x16xf32, #tpu.memory_space<vmem>>, vector<1x32x16xf32>,
    return
  }
  func.func @transform_0(%arg0: i32) -> (i32, i32, i32) {
    %c0_i32 = arith.constant 0 : i32
    %c0_i32_0 = arith.constant 0 : i32
    %c0_i32_1 = arith.constant 0 : i32
    return %arg0, %c0_i32, %c0_i32_0 : i32, i32, i32
  }
  func.func @transform_1(%arg0: i32) -> (i32, i32, i32) {
    %c0_i32 = arith.constant 0 : i32
    %c0_i32_0 = arith.constant 0 : i32
    %c0_i32_1 = arith.constant 0 : i32
    return %arg0, %c0_i32, %c0_i32_0 : i32, i32, i32
  }
  func.func @transform_2(%arg0: i32) -> (i32, i32) {
    %c0_i32 = arith.constant 0 : i32
    %c0_i32_0 = arith.constant 0 : i32
    %c0_i32_1 = arith.constant 0 : i32
    return %c0_i32, %c0_i32_0 : i32, i32
  }
  func.func @transform_3(%arg0: i32) -> (i32, i32) {
    %c0_i32 = arith.constant 0 : i32
    %c0_i32_0 = arith.constant 0 : i32
    %c0_i32_1 = arith.constant 0 : i32
    return %c0_i32, %c0_i32_0 : i32, i32
  }
  func.func @transform_4(%arg0: i32) -> (i32, i32) {
    %c0_i32 = arith.constant 0 : i32
    %c0_i32_0 = arith.constant 0 : i32
    %c0_i32_1 = arith.constant 0 : i32
    return %c0_i32, %c0_i32_0 : i32, i32
  }
  func.func @transform_5(%arg0: i32) -> (i32, i32) {
    %c0_i32 = arith.constant 0 : i32
    %c0_i32_0 = arith.constant 0 : i32
    %c0_i32_1 = arith.constant 0 : i32
    return %c0_i32, %c0_i32_0 : i32, i32
  }
  func.func @transform_6(%arg0: i32) -> (i32, i32) {
    %c0_i32 = arith.constant 0 : i32
    %c0_i32_0 = arith.constant 0 : i32
    %c0_i32_1 = arith.constant 0 : i32
    return %c0_i32, %c0_i32_0 : i32, i32
  }
  func.func @transform_7(%arg0: i32) -> (i32, i32) {
    %c0_i32 = arith.constant 0 : i32
    %c0_i32_0 = arith.constant 0 : i32
    %c0_i32_1 = arith.constant 0 : i32
    return %c0_i32, %c0_i32_0 : i32, i32
  }
  func.func @transform_8(%arg0: i32) -> (i32, i32) {
    %c0_i32 = arith.constant 0 : i32
    %c0_i32_0 = arith.constant 0 : i32
    %c0_i32_1 = arith.constant 0 : i32
    return %c0_i32, %c0_i32_0 : i32, i32
  }
  func.func @transform_9(%arg0: i32) -> (i32, i32, i32) {
    %c0_i32 = arith.constant 0 : i32
    %c0_i32_0 = arith.constant 0 : i32
    %c0_i32_1 = arith.constant 0 : i32
    return %arg0, %c0_i32, %c0_i32_0 : i32, i32, i32
  }
}

</mosaic_0001>

<llo_original>
// kernel: tpu_custom_call.1
$region0: #{tpu_custom_call.1}
  #allocation0 [shape = 'u32[]', space=smem, size = 0x4, offset = 0x4, fixed_abs, tag = 'smem constant byte address 0x4 - core index']
  #allocation1 [shape = 'u32[72,128]{1,0:T(1,128)}', space=vmem, size = 0x9000, scoped, tag = 'internal scratch']
  #allocation2 [shape = 'f32[32,16]{1,0:T(8,128)}', space=vmem, size = 0x4000, scoped, tag = 'scratch operand']
  #allocation3 [shape = 'f32[64,16]{1,0:T(8,128)}', space=vmem, size = 0x8000, scoped, tag = 'scratch operand']
  #allocation4 [shape = 'f32[32,16]{1,0:T(8,128)}', space=vmem, size = 0x4000, scoped, tag = 'scratch operand']
  %s0 = inlined_call_operand.vmem [shape: f32[2,32,16], index: 0, kind: input, shape index: {}]
  %s1 = inlined_call_operand.vmem [shape: f32[2,32,16], index: 1, kind: input, shape index: {}]
  %s2 = inlined_call_operand.vmem [shape: f32[32,32], index: 2, kind: input, shape index: {}]
  %s3 = inlined_call_operand.vmem [shape: f32[32,1], index: 3, kind: input, shape index: {}]
  %s4 = inlined_call_operand.vmem [shape: f32[64,32], index: 4, kind: input, shape index: {}]
  %s5 = inlined_call_operand.vmem [shape: f32[64,1], index: 5, kind: input, shape index: {}]
  %s6 = inlined_call_operand.vmem [shape: f32[32,32], index: 6, kind: input, shape index: {}]
  %s7 = inlined_call_operand.vmem [shape: f32[32,32], index: 7, kind: input, shape index: {}]
  %s8 = inlined_call_operand.vmem [shape: f32[32,1], index: 8, kind: input, shape index: {}]
  %s9 = inlined_call_operand.vmem [shape: f32[2,32,16], index: 9, kind: output, shape index: {}]
  %s10 = sld [smem:[#allocation0]]
  $region69: #{tpu_custom_call.1} parent=0
    _
  %s12 = ssub.s32 1, %s10
  %s13 = scalar_select 0, %s12, %s10
  loop: start=0, step=1, limit=4
  $region2: #{tpu_custom_call.1} parent=0 // loop_pre_header
    _
  $region3: #{tpu_custom_call.1} parent=0 // loop_header
    %s15 = sphi 0, %s19
    %p16 = scmp.ge.s32.totalorder %s15, 4
    %s25 = sphi 0, %s27
    %s28 = sphi 0, %s25
    %s29 = sphi 0, %s28
    %s45 = sphi 0, %s29
    %s51 = sphi 0, %s53
    %s54 = sphi 0, %s51
    %s55 = sphi 0, %s54
    %s71 = sphi 0, %s55
    %s75 = sphi 0, %s75
    %s77 = sphi 0, %s75
    %s78 = sphi 0, %s77
    %s92 = sphi 0, %s78
    %s96 = sphi 0, %s96
    %s98 = sphi 0, %s96
    %s99 = sphi 0, %s98
    %s113 = sphi 0, %s99
    %s117 = sphi 0, %s117
    %s119 = sphi 0, %s117
    %s120 = sphi 0, %s119
    %s134 = sphi 0, %s120
    %s138 = sphi 0, %s138
    %s140 = sphi 0, %s138
    %s141 = sphi 0, %s140
    %s155 = sphi 0, %s141
    %s159 = sphi 0, %s159
    %s161 = sphi 0, %s159
    %s162 = sphi 0, %s161
    %s176 = sphi 0, %s162
    %s180 = sphi 0, %s180
    %s182 = sphi 0, %s180
    %s183 = sphi 0, %s182
    %s197 = sphi 0, %s183
    %s201 = sphi 0, %s201
    %s203 = sphi 0, %s201
    %s204 = sphi 0, %s203
    %s218 = sphi 0, %s204
    %s224 = sphi 0, %s226
    %s227 = sphi 0, %s224
    %s228 = sphi 0, %s227
    %s244 = sphi 0, %s228
  $region4: #{tpu_custom_call.1} parent=0 // loop_header_branch
    %18 = sbr.rel (%p16) target = $region8
  $region5: #{tpu_custom_call.1} parent=0 // loop_body
    %s20 = ssub.s32 %s15, 1
    %s21 = ssub.s32 %s15, 2
    %s22 = sadd.s32 %s15, 1
    %s23 = ssub.s32 %s15, %s22
    %p24 = scmp.eq.s32.totalorder %s23, 0
    %s26 = sadd.s32 %s25, 1
    %s27 = scalar_select %p24, %s25, %s26
    %p30 = pneg %p24
    %p31 = scmp.eq.s32.totalorder %s15, 1
    %p32 = por %p30, %p31
    %p33 = scmp.ne.s32.totalorder %s25, %s28
    %p34 = scmp.eq.s32.totalorder %s15, 0
    %p35 = por %p33, %p34
    %p36 = scmp.ne.s32.totalorder %s25, %s28
    %p37 = scmp.eq.s32.totalorder %s20, 1
    %p38 = por %p36, %p37
    %p39 = scmp.ne.s32.totalorder %s28, %s29
    %p40 = scmp.eq.s32.totalorder %s20, 0
    %p41 = por %p39, %p40
    %p42 = scmp.ne.s32.totalorder %s28, %s29
    %p43 = scmp.eq.s32.totalorder %s21, 1
    %p44 = por %p42, %p43
    %p46 = scmp.ne.s32.totalorder %s29, %s45
    %p47 = scmp.eq.s32.totalorder %s21, 0
    %p48 = por %p46, %p47
    %s49 = ssub.s32 %s15, %s22
    %p50 = scmp.eq.s32.totalorder %s49, 0
    %s52 = sadd.s32 %s51, 1
    %s53 = scalar_select %p50, %s51, %s52
    %p56 = pneg %p50
    %p57 = scmp.eq.s32.totalorder %s15, 1
    %p58 = por %p56, %p57
    %p59 = scmp.ne.s32.totalorder %s51, %s54
    %p60 = scmp.eq.s32.totalorder %s15, 0
    %p61 = por %p59, %p60
    %p62 = scmp.ne.s32.totalorder %s51, %s54
    %p63 = scmp.eq.s32.totalorder %s20, 1
    %p64 = por %p62, %p63
    %p65 = scmp.ne.s32.totalorder %s54, %s55
    %p66 = scmp.eq.s32.totalorder %s20, 0
    %p67 = por %p65, %p66
    %p68 = scmp.ne.s32.totalorder %s54, %s55
    %p69 = scmp.eq.s32.totalorder %s21, 1
    %p70 = por %p68, %p69
    %p72 = scmp.ne.s32.totalorder %s55, %s71
    %p73 = scmp.eq.s32.totalorder %s21, 0
    %p74 = por %p72, %p73
    %s76 = sadd.s32 %s75, 1
    %p79 = scmp.eq.s32.totalorder %s15, 1
    %p80 = scmp.ne.s32.totalorder %s75, %s77
    %p81 = scmp.eq.s32.totalorder %s15, 0
    %p82 = por %p80, %p81
    %p83 = scmp.ne.s32.totalorder %s75, %s77
    %p84 = scmp.eq.s32.totalorder %s20, 1
    %p85 = por %p83, %p84
    %p86 = scmp.ne.s32.totalorder %s77, %s78
    %p87 = scmp.eq.s32.totalorder %s20, 0
    %p88 = por %p86, %p87
    %p89 = scmp.ne.s32.totalorder %s77, %s78
    %p90 = scmp.eq.s32.totalorder %s21, 1
    %p91 = por %p89, %p90
    %p93 = scmp.ne.s32.totalorder %s78, %s92
    %p94 = scmp.eq.s32.totalorder %s21, 0
    %p95 = por %p93, %p94
    %s97 = sadd.s32 %s96, 1
    %p100 = scmp.eq.s32.totalorder %s15, 1
    %p101 = scmp.ne.s32.totalorder %s96, %s98
    %p102 = scmp.eq.s32.totalorder %s15, 0
    %p103 = por %p101, %p102
    %p104 = scmp.ne.s32.totalorder %s96, %s98
    %p105 = scmp.eq.s32.totalorder %s20, 1
    %p106 = por %p104, %p105
    %p107 = scmp.ne.s32.totalorder %s98, %s99
    %p108 = scmp.eq.s32.totalorder %s20, 0
    %p109 = por %p107, %p108
    %p110 = scmp.ne.s32.totalorder %s98, %s99
    %p111 = scmp.eq.s32.totalorder %s21, 1
    %p112 = por %p110, %p111
    %p114 = scmp.ne.s32.totalorder %s99, %s113
    %p115 = scmp.eq.s32.totalorder %s21, 0
    %p116 = por %p114, %p115
    %s118 = sadd.s32 %s117, 1
    %p121 = scmp.eq.s32.totalorder %s15, 1
    %p122 = scmp.ne.s32.totalorder %s117, %s119
    %p123 = scmp.eq.s32.totalorder %s15, 0
    %p124 = por %p122, %p123
    %p125 = scmp.ne.s32.totalorder %s117, %s119
    %p126 = scmp.eq.s32.totalorder %s20, 1
    %p127 = por %p125, %p126
    %p128 = scmp.ne.s32.totalorder %s119, %s120
    %p129 = scmp.eq.s32.totalorder %s20, 0
    %p130 = por %p128, %p129
    %p131 = scmp.ne.s32.totalorder %s119, %s120
    %p132 = scmp.eq.s32.totalorder %s21, 1
    %p133 = por %p131, %p132
    %p135 = scmp.ne.s32.totalorder %s120, %s134
    %p136 = scmp.eq.s32.totalorder %s21, 0
    %p137 = por %p135, %p136
    %s139 = sadd.s32 %s138, 1
    %p142 = scmp.eq.s32.totalorder %s15, 1
    %p143 = scmp.ne.s32.totalorder %s138, %s140
    %p144 = scmp.eq.s32.totalorder %s15, 0
    %p145 = por %p143, %p144
    %p146 = scmp.ne.s32.totalorder %s138, %s140
    %p147 = scmp.eq.s32.totalorder %s20, 1
    %p148 = por %p146, %p147
    %p149 = scmp.ne.s32.totalorder %s140, %s141
    %p150 = scmp.eq.s32.totalorder %s20, 0
    %p151 = por %p149, %p150
    %p152 = scmp.ne.s32.totalorder %s140, %s141
    %p153 = scmp.eq.s32.totalorder %s21, 1
    %p154 = por %p152, %p153
    %p156 = scmp.ne.s32.totalorder %s141, %s155
    %p157 = scmp.eq.s32.totalorder %s21, 0
    %p158 = por %p156, %p157
    %s160 = sadd.s32 %s159, 1
    %p163 = scmp.eq.s32.totalorder %s15, 1
    %p164 = scmp.ne.s32.totalorder %s159, %s161
    %p165 = scmp.eq.s32.totalorder %s15, 0
    %p166 = por %p164, %p165
    %p167 = scmp.ne.s32.totalorder %s159, %s161
    %p168 = scmp.eq.s32.totalorder %s20, 1
    %p169 = por %p167, %p168
    %p170 = scmp.ne.s32.totalorder %s161, %s162
    %p171 = scmp.eq.s32.totalorder %s20, 0
    %p172 = por %p170, %p171
    %p173 = scmp.ne.s32.totalorder %s161, %s162
    %p174 = scmp.eq.s32.totalorder %s21, 1
    %p175 = por %p173, %p174
    %p177 = scmp.ne.s32.totalorder %s162, %s176
    %p178 = scmp.eq.s32.totalorder %s21, 0
    %p179 = por %p177, %p178
    %s181 = sadd.s32 %s180, 1
    %p184 = scmp.eq.s32.totalorder %s15, 1
    %p185 = scmp.ne.s32.totalorder %s180, %s182
    %p186 = scmp.eq.s32.totalorder %s15, 0
    %p187 = por %p185, %p186
    %p188 = scmp.ne.s32.totalorder %s180, %s182
    %p189 = scmp.eq.s32.totalorder %s20, 1
    %p190 = por %p188, %p189
    %p191 = scmp.ne.s32.totalorder %s182, %s183
    %p192 = scmp.eq.s32.totalorder %s20, 0
    %p193 = por %p191, %p192
    %p194 = scmp.ne.s32.totalorder %s182, %s183
    %p195 = scmp.eq.s32.totalorder %s21, 1
    %p196 = por %p194, %p195
    %p198 = scmp.ne.s32.totalorder %s183, %s197
    %p199 = scmp.eq.s32.totalorder %s21, 0
    %p200 = por %p198, %p199
    %s202 = sadd.s32 %s201, 1
    %p205 = scmp.eq.s32.totalorder %s15, 1
    %p206 = scmp.ne.s32.totalorder %s201, %s203
    %p207 = scmp.eq.s32.totalorder %s15, 0
    %p208 = por %p206, %p207
    %p209 = scmp.ne.s32.totalorder %s201, %s203
    %p210 = scmp.eq.s32.totalorder %s20, 1
    %p211 = por %p209, %p210
    %p212 = scmp.ne.s32.totalorder %s203, %s204
    %p213 = scmp.eq.s32.totalorder %s20, 0
    %p214 = por %p212, %p213
    %p215 = scmp.ne.s32.totalorder %s203, %s204
    %p216 = scmp.eq.s32.totalorder %s21, 1
    %p217 = por %p215, %p216
    %p219 = scmp.ne.s32.totalorder %s204, %s218
    %p220 = scmp.eq.s32.totalorder %s21, 0
    %p221 = por %p219, %p220
    %s222 = ssub.s32 %s15, %s22
    %p223 = scmp.eq.s32.totalorder %s222, 0
    %s225 = sadd.s32 %s224, 1
    %s226 = scalar_select %p223, %s224, %s225
    %p229 = pneg %p223
    %p230 = scmp.eq.s32.totalorder %s15, 1
    %p231 = por %p229, %p230
    %p232 = scmp.ne.s32.totalorder %s224, %s227
    %p233 = scmp.eq.s32.totalorder %s15, 0
    %p234 = por %p232, %p233
    %p235 = scmp.ne.s32.totalorder %s224, %s227
    %p236 = scmp.eq.s32.totalorder %s20, 1
    %p237 = por %p235, %p236
    %p238 = scmp.ne.s32.totalorder %s227, %s228
    %p239 = scmp.eq.s32.totalorder %s20, 0
    %p240 = por %p238, %p239
    %p241 = scmp.ne.s32.totalorder %s227, %s228
    %p242 = scmp.eq.s32.totalorder %s21, 1
    %p243 = por %p241, %p242
    %p245 = scmp.ne.s32.totalorder %s228, %s244
    %p246 = scmp.eq.s32.totalorder %s21, 0
    %p247 = por %p245, %p246
    %p248 = scmp.le.s32.totalorder 1, %s15
    %p249 = scmp.lt.s32.totalorder %s15, 3
    %p250 = pnand %p248, %p249
    %p251 = pneg %p250
    // Predicated region
    $region9: #{tpu_custom_call.1} parent=5 // pred_check
      _
    $region10: #{tpu_custom_call.1} parent=5 // pred_check_branch
      %253 = sbr.rel (%p250) target = $region12
    $region11: #{tpu_custom_call.1} parent=5 // pred_region
      %s254 = ssub.s32 %s15, 1
      // Predicated region
      $region13: #{tpu_custom_call.1} parent=11 // pred_check
        %p255 = pneg %p88
      $region14: #{tpu_custom_call.1} parent=11 // pred_check_branch
        %257 = sbr.rel (%p255) target = $region16
      $region15: #{tpu_custom_call.1} parent=11 // pred_region
        _
      $region16: #{tpu_custom_call.1} parent=11 // pred_fallthru
        _
      // Predicated region
      $region17: #{tpu_custom_call.1} parent=11 // pred_check
        %p258 = pneg %p109
      $region18: #{tpu_custom_call.1} parent=11 // pred_check_branch
        %260 = sbr.rel (%p258) target = $region20
      $region19: #{tpu_custom_call.1} parent=11 // pred_region
        _
      $region20: #{tpu_custom_call.1} parent=11 // pred_fallthru
        _
      // Predicated region
      $region21: #{tpu_custom_call.1} parent=11 // pred_check
        %p261 = pneg %p130
      $region22: #{tpu_custom_call.1} parent=11 // pred_check_branch
        %263 = sbr.rel (%p261) target = $region24
      $region23: #{tpu_custom_call.1} parent=11 // pred_region
        _
      $region24: #{tpu_custom_call.1} parent=11 // pred_fallthru
        _
      // Predicated region
      $region25: #{tpu_custom_call.1} parent=11 // pred_check
        %p264 = pneg %p151
      $region26: #{tpu_custom_call.1} parent=11 // pred_check_branch
        %266 = sbr.rel (%p264) target = $region28
      $region27: #{tpu_custom_call.1} parent=11 // pred_region
        _
      $region28: #{tpu_custom_call.1} parent=11 // pred_fallthru
        _
      // Predicated region
      $region29: #{tpu_custom_call.1} parent=11 // pred_check
        %p267 = pneg %p172
      $region30: #{tpu_custom_call.1} parent=11 // pred_check_branch
        %269 = sbr.rel (%p267) target = $region32
      $region31: #{tpu_custom_call.1} parent=11 // pred_region
        _
      $region32: #{tpu_custom_call.1} parent=11 // pred_fallthru
        _
      // Predicated region
      $region33: #{tpu_custom_call.1} parent=11 // pred_check
        %p270 = pneg %p193
      $region34: #{tpu_custom_call.1} parent=11 // pred_check_branch
        %272 = sbr.rel (%p270) target = $region36
      $region35: #{tpu_custom_call.1} parent=11 // pred_region
        _
      $region36: #{tpu_custom_call.1} parent=11 // pred_fallthru
        _
      // Predicated region
      $region37: #{tpu_custom_call.1} parent=11 // pred_check
        %p273 = pneg %p214
      $region38: #{tpu_custom_call.1} parent=11 // pred_check_branch
        %275 = sbr.rel (%p273) target = $region40
      $region39: #{tpu_custom_call.1} parent=11 // pred_region
        _
      $region40: #{tpu_custom_call.1} parent=11 // pred_fallthru
        _
    $region12: #{tpu_custom_call.1} parent=5 // pred_fallthru
      _
    %p276 = scmp.lt.s32.totalorder %s15, 2
    // Predicated region
    $region41: #{tpu_custom_call.1} parent=5 // pred_check
      %p277 = pneg %p276
    $region42: #{tpu_custom_call.1} parent=5 // pred_check_branch
      %279 = sbr.rel (%p277) target = $region44
    $region43: #{tpu_custom_call.1} parent=5 // pred_region
      // Predicated region
      $region45: #{tpu_custom_call.1} parent=43 // pred_check
        %p280 = pneg %p35
      $region46: #{tpu_custom_call.1} parent=43 // pred_check_branch
        %282 = sbr.rel (%p280) target = $region48
      $region47: #{tpu_custom_call.1} parent=43 // pred_region
        %p283 = scmp.lt.s32.totalorder %s15, 1
        %s284 = scalar_select %p283, %s15, 1
        %s285 = smul.addr %s284, 4
        %s286 = smul.addr %s285, 8
        %s287 = scalar_lea.vmem %s0, %s286
      $region48: #{tpu_custom_call.1} parent=43 // pred_fallthru
        _
      // Predicated region
      $region49: #{tpu_custom_call.1} parent=43 // pred_check
        %p288 = pneg %p61
      $region50: #{tpu_custom_call.1} parent=43 // pred_check_branch
        %290 = sbr.rel (%p288) target = $region52
      $region51: #{tpu_custom_call.1} parent=43 // pred_region
        %p291 = scmp.lt.s32.totalorder %s15, 1
        %s292 = scalar_select %p291, %s15, 1
        %s293 = smul.addr %s292, 4
        %s294 = smul.addr %s293, 8
        %s295 = scalar_lea.vmem %s1, %s294
      $region52: #{tpu_custom_call.1} parent=43 // pred_fallthru
        _
    $region44: #{tpu_custom_call.1} parent=5 // pred_fallthru
      _
    %p296 = scmp.le.s32.totalorder 1, %s15
    %p297 = scmp.lt.s32.totalorder %s15, 3
    %p298 = pnand %p296, %p297
    %p299 = pneg %p298
    // Predicated region
    $region53: #{tpu_custom_call.1} parent=5 // pred_check
      _
    $region54: #{tpu_custom_call.1} parent=5 // pred_check_branch
      %301 = sbr.rel (%p298) target = $region56
    $region55: #{tpu_custom_call.1} parent=5 // pred_region
      %s302 = ssub.s32 %s15, 1
      %p303 = scmp.lt.s32.totalorder %s20, 1
      %s304 = scalar_select %p303, %s20, 1
      %s305 = smul.addr %s304, 4
      %s306 = smul.addr %s305, 8
      %s307 = scalar_lea.vmem %s0, %s306
      %p308 = pneg %p41
      %p309 = pneg %p38
      %p310 = scmp.lt.s32.totalorder %s20, 1
      %s311 = scalar_select %p310, %s20, 1
      %s312 = smul.addr %s311, 4
      %s313 = smul.addr %s312, 8
      %s314 = scalar_lea.vmem %s1, %s313
      %p315 = pneg %p67
      %p316 = pneg %p64
      %p317 = pneg %p88
      %p318 = pneg %p85
      %p319 = pneg %p109
      %p320 = pneg %p106
      %p321 = pneg %p130
      %p322 = pneg %p127
      %p323 = pneg %p151
      %p324 = pneg %p148
      %p325 = pneg %p172
      %p326 = pneg %p169
      %p327 = pneg %p193
      %p328 = pneg %p190
      %p329 = pneg %p214
      %p330 = pneg %p211
      %p331 = pneg %p240
      %p332 = pneg %p237
      %p333 = scmp.lt.s32.totalorder %s20, 1
      %s334 = scalar_select %p333, %s20, 1
      %s335 = smul.addr %s334, 4
      %s336 = smul.addr %s335, 8
      %s337 = scalar_lea.vmem %s9, %s336
      %p338 = scmp.lt.s32.totalorder %s20, 1
      %s339 = scalar_select %p338, %s20, 1
      %s340 = smul.addr %s339, 4
      %s341 = smul.addr %s340, 8
      %s342 = scalar_lea.vmem %s0, %s341
      %p343 = scmp.lt.s32.totalorder %s20, 1
      %s344 = scalar_select %p343, %s20, 1
      %s345 = smul.addr %s344, 4
      %s346 = smul.addr %s345, 8
      %s347 = scalar_lea.vmem %s1, %s346
      %p348 = scmp.lt.s32.totalorder %s20, 1
      %s349 = scalar_select %p348, %s20, 1
      %s350 = smul.addr %s349, 4
      %s351 = smul.addr %s350, 8
      %s352 = scalar_lea.vmem %s9, %s351
      %v353 = vld [vmem:[%s2] sm:$0xff]
      %v354 = vld [vmem:[%s2 + $0x8] sm:$0xff]
      %v355 = vld [vmem:[%s2 + $0x10] sm:$0xff]
      %v356 = vld [vmem:[%s2 + $0x18] sm:$0xff]
      %v357 = vld [vmem:[%s342] sm:$0xff]
      %v358 = vld [vmem:[%s342 + $0x8] sm:$0xff]
      %v359 = vld [vmem:[%s342 + $0x10] sm:$0xff]
      %v360 = vld [vmem:[%s342 + $0x18] sm:$0xff]
      %v361 = vld [vmem:[%s3] sm:$0xff]
      %v362 = vld [vmem:[%s3 + $0x8] sm:$0xff]
      %v363 = vld [vmem:[%s3 + $0x10] sm:$0xff]
      %v364 = vld [vmem:[%s3 + $0x18] sm:$0xff]
      %366 = vset.pattern.permute.xlu0 0
      %367 = vperm.xlu0 %366, %v361
      %v368 = vpop.permute.xlu0 %367
      %371 = vset.pattern.permute.xlu0 0
      %372 = vperm.xlu0 %371, %v362
      %v373 = vpop.permute.xlu0 %372
      %376 = vset.pattern.permute.xlu0 0
      %377 = vperm.xlu0 %376, %v363
      %v378 = vpop.permute.xlu0 %377
      %381 = vset.pattern.permute.xlu0 0
      %382 = vperm.xlu0 %381, %v364
      %v383 = vpop.permute.xlu0 %382
      %vm385 = vcmask 261120
      %v387 = vsel %vm385, %v353, 0
      %v390 = vsel %vm385, %v354, 0
      %v393 = vsel %vm385, %v355, 0
      %v396 = vsel %vm385, %v356, 0
      %398 = vmatpush.msra.mxu0 0.0
      %399 = vmatpush.msra.mxu0 0.0
      %400 = vmatpush.msra.mxu0 0.0
      %401 = vmatpush.msra.mxu0 0.0
      %402 = vmatpush.msra.mxu0 0.0
      %403 = vmatpush.msra.mxu0 0.0
      %404 = vmatpush.msra.mxu0 0.0
      %405 = vmatpush.msra.mxu0 0.0
      %406 = vmatpush.msra.mxu0 0.0
      %407 = vmatpush.msra.mxu0 0.0
      %408 = vmatpush.msra.mxu0 0.0
      %409 = vmatpush.msra.mxu0 0.0
      %410 = vmatpush.msra.mxu0 %v360
      %411 = vmatpush.msra.mxu0 %v359
      %412 = vmatpush.msra.mxu0 %v358
      %413 = vmatpush.msra.mxu0 %v357
      %414 = vmatmul.f32.gmra.mxu0 %v387
      %v415 = vpop.f32.mrf.mxu0
      %v416 = vadd.f32 %v368, %v415
      %417 = vmatmul.f32.gmra.mxu0 %v390
      %v418 = vpop.f32.mrf.mxu0
      %v419 = vadd.f32 %v373, %v418
      %420 = vmatmul.f32.gmra.mxu0 %v393
      %v421 = vpop.f32.mrf.mxu0
      %v422 = vadd.f32 %v378, %v421
      %423 = vmatmul.f32.gmra.mxu0 %v396
      %v424 = vpop.f32.mrf.mxu0
      %v425 = vadd.f32 %v383, %v424
      %426 = vdwg.mxu0
      %vm427 = vcmask 130048
      %428 = vst.msk [vmem:[#allocation2] sm:$0xff] %vm427, %v416
      %429 = vst.msk [vmem:[#allocation2 + $0x8] sm:$0xff] %vm427, %v419
      %430 = vst.msk [vmem:[#allocation2 + $0x10] sm:$0xff] %vm427, %v422
      %431 = vst.msk [vmem:[#allocation2 + $0x18] sm:$0xff] %vm427, %v425
      %v432 = vld [vmem:[%s4] sm:$0xff]
      %v433 = vld [vmem:[%s4 + $0x8] sm:$0xff]
      %v434 = vld [vmem:[%s4 + $0x10] sm:$0xff]
      %v435 = vld [vmem:[%s4 + $0x18] sm:$0xff]
      %v436 = vld [vmem:[%s4 + $0x20] sm:$0xff]
      %v437 = vld [vmem:[%s4 + $0x28] sm:$0xff]
      %v438 = vld [vmem:[%s4 + $0x30] sm:$0xff]
      %v439 = vld [vmem:[%s4 + $0x38] sm:$0xff]
      %v440 = vld [vmem:[%s347] sm:$0xff]
      %v441 = vld [vmem:[%s347 + $0x8] sm:$0xff]
      %v442 = vld [vmem:[%s347 + $0x10] sm:$0xff]
      %v443 = vld [vmem:[%s347 + $0x18] sm:$0xff]
      %v444 = vld [vmem:[%s5] sm:$0xff]
      %v445 = vld [vmem:[%s5 + $0x8] sm:$0xff]
      %v446 = vld [vmem:[%s5 + $0x10] sm:$0xff]
      %v447 = vld [vmem:[%s5 + $0x18] sm:$0xff]
      %v448 = vld [vmem:[%s5 + $0x20] sm:$0xff]
      %v449 = vld [vmem:[%s5 + $0x28] sm:$0xff]
      %v450 = vld [vmem:[%s5 + $0x30] sm:$0xff]
      %v451 = vld [vmem:[%s5 + $0x38] sm:$0xff]
      %453 = vset.pattern.permute.xlu0 0
      %454 = vperm.xlu0 %453, %v444
      %v455 = vpop.permute.xlu0 %454
      %458 = vset.pattern.permute.xlu0 0
      %459 = vperm.xlu0 %458, %v445
      %v460 = vpop.permute.xlu0 %459
      %463 = vset.pattern.permute.xlu0 0
      %464 = vperm.xlu0 %463, %v446
      %v465 = vpop.permute.xlu0 %464
      %468 = vset.pattern.permute.xlu0 0
      %469 = vperm.xlu0 %468, %v447
      %v470 = vpop.permute.xlu0 %469
      %473 = vset.pattern.permute.xlu0 0
      %474 = vperm.xlu0 %473, %v448
      %v475 = vpop.permute.xlu0 %474
      %478 = vset.pattern.permute.xlu0 0
      %479 = vperm.xlu0 %478, %v449
      %v480 = vpop.permute.xlu0 %479
      %483 = vset.pattern.permute.xlu0 0
      %484 = vperm.xlu0 %483, %v450
      %v485 = vpop.permute.xlu0 %484
      %488 = vset.pattern.permute.xlu0 0
      %489 = vperm.xlu0 %488, %v451
      %v490 = vpop.permute.xlu0 %489
      %v493 = vsel %vm385, %v432, 0
      %v496 = vsel %vm385, %v433, 0
      %v499 = vsel %vm385, %v434, 0
      %v502 = vsel %vm385, %v435, 0
      %v505 = vsel %vm385, %v436, 0
      %v508 = vsel %vm385, %v437, 0
      %v511 = vsel %vm385, %v438, 0
      %v514 = vsel %vm385, %v439, 0
      %516 = vmatpush.msra.mxu0 0.0
      %517 = vmatpush.msra.mxu0 0.0
      %518 = vmatpush.msra.mxu0 0.0
      %519 = vmatpush.msra.mxu0 0.0
      %520 = vmatpush.msra.mxu0 0.0
      %521 = vmatpush.msra.mxu0 0.0
      %522 = vmatpush.msra.mxu0 0.0
      %523 = vmatpush.msra.mxu0 0.0
      %524 = vmatpush.msra.mxu0 0.0
      %525 = vmatpush.msra.mxu0 0.0
      %526 = vmatpush.msra.mxu0 0.0
      %527 = vmatpush.msra.mxu0 0.0
      %528 = vmatpush.msra.mxu0 %v443
      %529 = vmatpush.msra.mxu0 %v442
      %530 = vmatpush.msra.mxu0 %v441
      %531 = vmatpush.msra.mxu0 %v440
      %532 = vmatmul.f32.gmra.mxu0 %v493
      %v533 = vpop.f32.mrf.mxu0
      %v534 = vadd.f32 %v455, %v533
      %535 = vmatmul.f32.gmra.mxu0 %v496
      %v536 = vpop.f32.mrf.mxu0
      %v537 = vadd.f32 %v460, %v536
      %538 = vmatmul.f32.gmra.mxu0 %v499
      %v539 = vpop.f32.mrf.mxu0
      %v540 = vadd.f32 %v465, %v539
      %541 = vmatmul.f32.gmra.mxu0 %v502
      %v542 = vpop.f32.mrf.mxu0
      %v543 = vadd.f32 %v470, %v542
      %544 = vmatmul.f32.gmra.mxu0 %v505
      %v545 = vpop.f32.mrf.mxu0
      %v546 = vadd.f32 %v475, %v545
      %547 = vmatmul.f32.gmra.mxu0 %v508
      %v548 = vpop.f32.mrf.mxu0
      %v549 = vadd.f32 %v480, %v548
      %550 = vmatmul.f32.gmra.mxu0 %v511
      %v551 = vpop.f32.mrf.mxu0
      %v552 = vadd.f32 %v485, %v551
      %553 = vmatmul.f32.gmra.mxu0 %v514
      %v554 = vpop.f32.mrf.mxu0
      %v555 = vadd.f32 %v490, %v554
      %556 = vdwg.mxu0
      %557 = vst.msk [vmem:[#allocation3] sm:$0xff] %vm427, %v534
      %558 = vst.msk [vmem:[#allocation3 + $0x8] sm:$0xff] %vm427, %v537
      %559 = vst.msk [vmem:[#allocation3 + $0x10] sm:$0xff] %vm427, %v540
      %560 = vst.msk [vmem:[#allocation3 + $0x18] sm:$0xff] %vm427, %v543
      %561 = vst.msk [vmem:[#allocation3 + $0x20] sm:$0xff] %vm427, %v546
      %562 = vst.msk [vmem:[#allocation3 + $0x28] sm:$0xff] %vm427, %v549
      %563 = vst.msk [vmem:[#allocation3 + $0x30] sm:$0xff] %vm427, %v552
      %564 = vst.msk [vmem:[#allocation3 + $0x38] sm:$0xff] %vm427, %v555
      %v565 = vld [vmem:[#allocation2] sm:$0xff]
      %v566 = vld [vmem:[#allocation3] sm:$0xff]
      %v567 = vld [vmem:[#allocation3 + $0x20] sm:$0xff]
      %568 = vxpose.xlu0.b32.start [1/16] %v566, 128
      %569 = vxpose.xlu0.b32.cont [2/16] 0.0, 128
      %570 = vxpose.xlu0.b32.cont [3/16] 0.0, 128
      %571 = vxpose.xlu0.b32.cont [4/16] 0.0, 128
      %572 = vxpose.xlu0.b32.cont [5/16] 0.0, 128
      %573 = vxpose.xlu0.b32.cont [6/16] 0.0, 128
      %574 = vxpose.xlu0.b32.cont [7/16] 0.0, 128
      %575 = vxpose.xlu0.b32.cont [8/16] 0.0, 128
      %576 = vxpose.xlu0.b32.cont [9/16] 0.0, 128
      %577 = vxpose.xlu0.b32.cont [10/16] 0.0, 128
      %578 = vxpose.xlu0.b32.cont [11/16] 0.0, 128
      %579 = vxpose.xlu0.b32.cont [12/16] 0.0, 128
      %580 = vxpose.xlu0.b32.cont [13/16] 0.0, 128
      %581 = vxpose.xlu0.b32.cont [14/16] 0.0, 128
      %582 = vxpose.xlu0.b32.cont [15/16] 0.0, 128
      %583 = vxpose.xlu0.b32.end [16/16] 0.0, 128
      %v584 = vpop.trf.xlu0
      %v585 = vpop.trf.xlu0
      %v586 = vpop.trf.xlu0
      %v587 = vpop.trf.xlu0
      %v588 = vpop.trf.xlu0
      %v589 = vpop.trf.xlu0
      %v590 = vpop.trf.xlu0
      %v591 = vpop.trf.xlu0
      %v592 = vpop.trf.xlu0
      %v593 = vpop.trf.xlu0
      %v594 = vpop.trf.xlu0
      %v595 = vpop.trf.xlu0
      %v596 = vpop.trf.xlu0
      %v597 = vpop.trf.xlu0
      %v598 = vpop.trf.xlu0
      %v599 = vpop.trf.xlu0
      %vm600 = vcmask 64512
      %v602 = vsel %vm600, %v584, 0
      %v605 = vsel %vm600, %v585, 0
      %607 = vmatpush.msra.mxu0 0.0
      %608 = vmatpush.msra.mxu0 0.0
      %609 = vmatpush.msra.mxu0 0.0
      %610 = vmatpush.msra.mxu0 0.0
      %611 = vmatpush.msra.mxu0 0.0
      %612 = vmatpush.msra.mxu0 0.0
      %613 = vmatpush.msra.mxu0 0.0
      %614 = vmatpush.msra.mxu0 0.0
      %615 = vmatpush.msra.mxu0 0.0
      %616 = vmatpush.msra.mxu0 0.0
      %617 = vmatpush.msra.mxu0 0.0
      %618 = vmatpush.msra.mxu0 0.0
      %619 = vmatpush.msra.mxu0 0.0
      %620 = vmatpush.msra.mxu0 0.0
      %621 = vmatpush.msra.mxu0 0.0
      %622 = vmatpush.msra.mxu0 %v565
      %623 = vmatmul.f32.gmra.mxu0 %v602
      %v624 = vpop.f32.mrf.mxu0
      %v625 = vadd.f32 0.0, %v624
      %626 = vmatmul.f32.gmra.mxu0 %v605
      %v627 = vpop.f32.mrf.mxu0
      %v628 = vadd.f32 0.0, %v627
      %629 = vdwg.mxu0
      %v630 = vsel %vm427, %v625, -inf
      %v631 = vsel %vm427, %v628, -inf
      %v632 = vmax.f32 %v630, %v631
      %v633 = vrot.slane %v632, 4
      %v634 = vmax.f32 %v632, %v633
      %v635 = vrot.slane %v634, 2
      %v636 = vmax.f32 %v634, %v635
      %v637 = vrot.slane %v636, 1
      %v638 = vmax.f32 %v636, %v637
      %v639 = vsub.f32 %v625, %v638
      %v640 = vsub.f32 %v628, %v638
      %v641 = vmul.f32 %v639, 1.442695
      %v642 = vpow.pop %v641
      %v643 = vmul.f32 %v640, 1.442695
      %v644 = vpow.pop %v643
      %v645 = vsel %vm427, %v642, 0.0
      %v646 = vsel %vm427, %v644, 0.0
      %v647 = vadd.f32 %v645, %v646
      %v648 = vrot.slane %v647, 4
      %v649 = vadd.f32 %v647, %v648
      %v650 = vrot.slane %v649, 2
      %v651 = vadd.f32 %v649, %v650
      %v652 = vrot.slane %v651, 1
      %v653 = vadd.f32 %v651, %v652
      %v655 = vsel %vm427, %v567, 0
      %657 = vmatpush.msra.mxu0 0.0
      %658 = vmatpush.msra.mxu0 0.0
      %659 = vmatpush.msra.mxu0 0.0
      %660 = vmatpush.msra.mxu0 0.0
      %661 = vmatpush.msra.mxu0 0.0
      %662 = vmatpush.msra.mxu0 0.0
      %663 = vmatpush.msra.mxu0 0.0
      %664 = vmatpush.msra.mxu0 0.0
      %665 = vmatpush.msra.mxu0 0.0
      %666 = vmatpush.msra.mxu0 0.0
      %667 = vmatpush.msra.mxu0 0.0
      %668 = vmatpush.msra.mxu0 0.0
      %669 = vmatpush.msra.mxu0 0.0
      %670 = vmatpush.msra.mxu0 0.0
      %671 = vmatpush.msra.mxu0 %v644
      %672 = vmatpush.msra.mxu0 %v642
      %673 = vmatmul.f32.gmra.mxu0 %v655
      %v674 = vpop.f32.mrf.mxu0
      %v675 = vadd.f32 0.0, %v674
      %676 = vdwg.mxu0
      %v677 = vrcp.pop %v653
      %v678 = vmul.f32 %v675, %v677
      %679 = vst.msk [vmem:[#allocation4] sm:$0xff] %vm427, %v678
      %v680 = vld [vmem:[#allocation2 + $0x8] sm:$0xff]
      %v681 = vld [vmem:[#allocation3 + $0x8] sm:$0xff]
      %v682 = vld [vmem:[#allocation3 + $0x28] sm:$0xff]
      %683 = vxpose.xlu0.b32.start [1/16] %v681, 128
      %684 = vxpose.xlu0.b32.cont [2/16] 0.0, 128
      %685 = vxpose.xlu0.b32.cont [3/16] 0.0, 128
      %686 = vxpose.xlu0.b32.cont [4/16] 0.0, 128
      %687 = vxpose.xlu0.b32.cont [5/16] 0.0, 128
      %688 = vxpose.xlu0.b32.cont [6/16] 0.0, 128
      %689 = vxpose.xlu0.b32.cont [7/16] 0.0, 128
      %690 = vxpose.xlu0.b32.cont [8/16] 0.0, 128
      %691 = vxpose.xlu0.b32.cont [9/16] 0.0, 128
      %692 = vxpose.xlu0.b32.cont [10/16] 0.0, 128
      %693 = vxpose.xlu0.b32.cont [11/16] 0.0, 128
      %694 = vxpose.xlu0.b32.cont [12/16] 0.0, 128
      %695 = vxpose.xlu0.b32.cont [13/16] 0.0, 128
      %696 = vxpose.xlu0.b32.cont [14/16] 0.0, 128
      %697 = vxpose.xlu0.b32.cont [15/16] 0.0, 128
      %698 = vxpose.xlu0.b32.end [16/16] 0.0, 128
      %v699 = vpop.trf.xlu0
      %v700 = vpop.trf.xlu0
      %v701 = vpop.trf.xlu0
      %v702 = vpop.trf.xlu0
      %v703 = vpop.trf.xlu0
      %v704 = vpop.trf.xlu0
      %v705 = vpop.trf.xlu0
      %v706 = vpop.trf.xlu0
      %v707 = vpop.trf.xlu0
      %v708 = vpop.trf.xlu0
      %v709 = vpop.trf.xlu0
      %v710 = vpop.trf.xlu0
      %v711 = vpop.trf.xlu0
      %v712 = vpop.trf.xlu0
      %v713 = vpop.trf.xlu0
      %v714 = vpop.trf.xlu0
      %v716 = vsel %vm600, %v699, 0
      %v719 = vsel %vm600, %v700, 0
      %721 = vmatpush.msra.mxu0 0.0
      %722 = vmatpush.msra.mxu0 0.0
      %723 = vmatpush.msra.mxu0 0.0
      %724 = vmatpush.msra.mxu0 0.0
      %725 = vmatpush.msra.mxu0 0.0
      %726 = vmatpush.msra.mxu0 0.0
      %727 = vmatpush.msra.mxu0 0.0
      %728 = vmatpush.msra.mxu0 0.0
      %729 = vmatpush.msra.mxu0 0.0
      %730 = vmatpush.msra.mxu0 0.0
      %731 = vmatpush.msra.mxu0 0.0
      %732 = vmatpush.msra.mxu0 0.0
      %733 = vmatpush.msra.mxu0 0.0
      %734 = vmatpush.msra.mxu0 0.0
      %735 = vmatpush.msra.mxu0 0.0
      %736 = vmatpush.msra.mxu0 %v680
      %737 = vmatmul.f32.gmra.mxu0 %v716
      %v738 = vpop.f32.mrf.mxu0
      %v739 = vadd.f32 0.0, %v738
      %740 = vmatmul.f32.gmra.mxu0 %v719
      %v741 = vpop.f32.mrf.mxu0
      %v742 = vadd.f32 0.0, %v741
      %743 = vdwg.mxu0
      %v744 = vsel %vm427, %v739, -inf
      %v745 = vsel %vm427, %v742, -inf
      %v746 = vmax.f32 %v744, %v745
      %v747 = vrot.slane %v746, 4
      %v748 = vmax.f32 %v746, %v747
      %v749 = vrot.slane %v748, 2
      %v750 = vmax.f32 %v748, %v749
      %v751 = vrot.slane %v750, 1
      %v752 = vmax.f32 %v750, %v751
      %v753 = vsub.f32 %v739, %v752
      %v754 = vsub.f32 %v742, %v752
      %v755 = vmul.f32 %v753, 1.442695
      %v756 = vpow.pop %v755
      %v757 = vmul.f32 %v754, 1.442695
      %v758 = vpow.pop %v757
      %v759 = vsel %vm427, %v756, 0.0
      %v760 = vsel %vm427, %v758, 0.0
      %v761 = vadd.f32 %v759, %v760
      %v762 = vrot.slane %v761, 4
      %v763 = vadd.f32 %v761, %v762
      %v764 = vrot.slane %v763, 2
      %v765 = vadd.f32 %v763, %v764
      %v766 = vrot.slane %v765, 1
      %v767 = vadd.f32 %v765, %v766
      %v769 = vsel %vm427, %v682, 0
      %771 = vmatpush.msra.mxu0 0.0
      %772 = vmatpush.msra.mxu0 0.0
      %773 = vmatpush.msra.mxu0 0.0
      %774 = vmatpush.msra.mxu0 0.0
      %775 = vmatpush.msra.mxu0 0.0
      %776 = vmatpush.msra.mxu0 0.0
      %777 = vmatpush.msra.mxu0 0.0
      %778 = vmatpush.msra.mxu0 0.0
      %779 = vmatpush.msra.mxu0 0.0
      %780 = vmatpush.msra.mxu0 0.0
      %781 = vmatpush.msra.mxu0 0.0
      %782 = vmatpush.msra.mxu0 0.0
      %783 = vmatpush.msra.mxu0 0.0
      %784 = vmatpush.msra.mxu0 0.0
      %785 = vmatpush.msra.mxu0 %v758
      %786 = vmatpush.msra.mxu0 %v756
      %787 = vmatmul.f32.gmra.mxu0 %v769
      %v788 = vpop.f32.mrf.mxu0
      %v789 = vadd.f32 0.0, %v788
      %790 = vdwg.mxu0
      %v791 = vrcp.pop %v767
      %v792 = vmul.f32 %v789, %v791
      %793 = vst.msk [vmem:[#allocation4 + $0x8] sm:$0xff] %vm427, %v792
      %v794 = vld [vmem:[#allocation2 + $0x10] sm:$0xff]
      %v795 = vld [vmem:[#allocation3 + $0x10] sm:$0xff]
      %v796 = vld [vmem:[#allocation3 + $0x30] sm:$0xff]
      %797 = vxpose.xlu0.b32.start [1/16] %v795, 128
      %798 = vxpose.xlu0.b32.cont [2/16] 0.0, 128
      %799 = vxpose.xlu0.b32.cont [3/16] 0.0, 128
      %800 = vxpose.xlu0.b32.cont [4/16] 0.0, 128
      %801 = vxpose.xlu0.b32.cont [5/16] 0.0, 128
      %802 = vxpose.xlu0.b32.cont [6/16] 0.0, 128
      %803 = vxpose.xlu0.b32.cont [7/16] 0.0, 128
      %804 = vxpose.xlu0.b32.cont [8/16] 0.0, 128
      %805 = vxpose.xlu0.b32.cont [9/16] 0.0, 128
      %806 = vxpose.xlu0.b32.cont [10/16] 0.0, 128
      %807 = vxpose.xlu0.b32.cont [11/16] 0.0, 128
      %808 = vxpose.xlu0.b32.cont [12/16] 0.0, 128
      %809 = vxpose.xlu0.b32.cont [13/16] 0.0, 128
      %810 = vxpose.xlu0.b32.cont [14/16] 0.0, 128
      %811 = vxpose.xlu0.b32.cont [15/16] 0.0, 128
      %812 = vxpose.xlu0.b32.end [16/16] 0.0, 128
      %v813 = vpop.trf.xlu0
      %v814 = vpop.trf.xlu0
      %v815 = vpop.trf.xlu0
      %v816 = vpop.trf.xlu0
      %v817 = vpop.trf.xlu0
      %v818 = vpop.trf.xlu0
      %v819 = vpop.trf.xlu0
      %v820 = vpop.trf.xlu0
      %v821 = vpop.trf.xlu0
      %v822 = vpop.trf.xlu0
      %v823 = vpop.trf.xlu0
      %v824 = vpop.trf.xlu0
      %v825 = vpop.trf.xlu0
      %v826 = vpop.trf.xlu0
      %v827 = vpop.trf.xlu0
      %v828 = vpop.trf.xlu0
      %v830 = vsel %vm600, %v813, 0
      %v833 = vsel %vm600, %v814, 0
      %835 = vmatpush.msra.mxu0 0.0
      %836 = vmatpush.msra.mxu0 0.0
      %837 = vmatpush.msra.mxu0 0.0
      %838 = vmatpush.msra.mxu0 0.0
      %839 = vmatpush.msra.mxu0 0.0
      %840 = vmatpush.msra.mxu0 0.0
      %841 = vmatpush.msra.mxu0 0.0
      %842 = vmatpush.msra.mxu0 0.0
      %843 = vmatpush.msra.mxu0 0.0
      %844 = vmatpush.msra.mxu0 0.0
      %845 = vmatpush.msra.mxu0 0.0
      %846 = vmatpush.msra.mxu0 0.0
      %847 = vmatpush.msra.mxu0 0.0
      %848 = vmatpush.msra.mxu0 0.0
      %849 = vmatpush.msra.mxu0 0.0
      %850 = vmatpush.msra.mxu0 %v794
      %851 = vmatmul.f32.gmra.mxu0 %v830
      %v852 = vpop.f32.mrf.mxu0
      %v853 = vadd.f32 0.0, %v852
      %854 = vmatmul.f32.gmra.mxu0 %v833
      %v855 = vpop.f32.mrf.mxu0
      %v856 = vadd.f32 0.0, %v855
      %857 = vdwg.mxu0
      %v858 = vsel %vm427, %v853, -inf
      %v859 = vsel %vm427, %v856, -inf
      %v860 = vmax.f32 %v858, %v859
      %v861 = vrot.slane %v860, 4
      %v862 = vmax.f32 %v860, %v861
      %v863 = vrot.slane %v862, 2
      %v864 = vmax.f32 %v862, %v863
      %v865 = vrot.slane %v864, 1
      %v866 = vmax.f32 %v864, %v865
      %v867 = vsub.f32 %v853, %v866
      %v868 = vsub.f32 %v856, %v866
      %v869 = vmul.f32 %v867, 1.442695
      %v870 = vpow.pop %v869
      %v871 = vmul.f32 %v868, 1.442695
      %v872 = vpow.pop %v871
      %v873 = vsel %vm427, %v870, 0.0
      %v874 = vsel %vm427, %v872, 0.0
      %v875 = vadd.f32 %v873, %v874
      %v876 = vrot.slane %v875, 4
      %v877 = vadd.f32 %v875, %v876
      %v878 = vrot.slane %v877, 2
      %v879 = vadd.f32 %v877, %v878
      %v880 = vrot.slane %v879, 1
      %v881 = vadd.f32 %v879, %v880
      %v883 = vsel %vm427, %v796, 0
      %885 = vmatpush.msra.mxu0 0.0
      %886 = vmatpush.msra.mxu0 0.0
      %887 = vmatpush.msra.mxu0 0.0
      %888 = vmatpush.msra.mxu0 0.0
      %889 = vmatpush.msra.mxu0 0.0
      %890 = vmatpush.msra.mxu0 0.0
      %891 = vmatpush.msra.mxu0 0.0
      %892 = vmatpush.msra.mxu0 0.0
      %893 = vmatpush.msra.mxu0 0.0
      %894 = vmatpush.msra.mxu0 0.0
      %895 = vmatpush.msra.mxu0 0.0
      %896 = vmatpush.msra.mxu0 0.0
      %897 = vmatpush.msra.mxu0 0.0
      %898 = vmatpush.msra.mxu0 0.0
      %899 = vmatpush.msra.mxu0 %v872
      %900 = vmatpush.msra.mxu0 %v870
      %901 = vmatmul.f32.gmra.mxu0 %v883
      %v902 = vpop.f32.mrf.mxu0
      %v903 = vadd.f32 0.0, %v902
      %904 = vdwg.mxu0
      %v905 = vrcp.pop %v881
      %v906 = vmul.f32 %v903, %v905
      %907 = vst.msk [vmem:[#allocation4 + $0x10] sm:$0xff] %vm427, %v906
      %v908 = vld [vmem:[#allocation2 + $0x18] sm:$0xff]
      %v909 = vld [vmem:[#allocation3 + $0x18] sm:$0xff]
      %v910 = vld [vmem:[#allocation3 + $0x38] sm:$0xff]
      %911 = vxpose.xlu0.b32.start [1/16] %v909, 128
      %912 = vxpose.xlu0.b32.cont [2/16] 0.0, 128
      %913 = vxpose.xlu0.b32.cont [3/16] 0.0, 128
      %914 = vxpose.xlu0.b32.cont [4/16] 0.0, 128
      %915 = vxpose.xlu0.b32.cont [5/16] 0.0, 128
      %916 = vxpose.xlu0.b32.cont [6/16] 0.0, 128
      %917 = vxpose.xlu0.b32.cont [7/16] 0.0, 128
      %918 = vxpose.xlu0.b32.cont [8/16] 0.0, 128
      %919 = vxpose.xlu0.b32.cont [9/16] 0.0, 128
      %920 = vxpose.xlu0.b32.cont [10/16] 0.0, 128
      %921 = vxpose.xlu0.b32.cont [11/16] 0.0, 128
      %922 = vxpose.xlu0.b32.cont [12/16] 0.0, 128
      %923 = vxpose.xlu0.b32.cont [13/16] 0.0, 128
      %924 = vxpose.xlu0.b32.cont [14/16] 0.0, 128
      %925 = vxpose.xlu0.b32.cont [15/16] 0.0, 128
      %926 = vxpose.xlu0.b32.end [16/16] 0.0, 128
      %v927 = vpop.trf.xlu0
      %v928 = vpop.trf.xlu0
      %v929 = vpop.trf.xlu0
      %v930 = vpop.trf.xlu0
      %v931 = vpop.trf.xlu0
      %v932 = vpop.trf.xlu0
      %v933 = vpop.trf.xlu0
      %v934 = vpop.trf.xlu0
      %v935 = vpop.trf.xlu0
      %v936 = vpop.trf.xlu0
      %v937 = vpop.trf.xlu0
      %v938 = vpop.trf.xlu0
      %v939 = vpop.trf.xlu0
      %v940 = vpop.trf.xlu0
      %v941 = vpop.trf.xlu0
      %v942 = vpop.trf.xlu0
      %v944 = vsel %vm600, %v927, 0
      %v947 = vsel %vm600, %v928, 0
      %949 = vmatpush.msra.mxu0 0.0
      %950 = vmatpush.msra.mxu0 0.0
      %951 = vmatpush.msra.mxu0 0.0
      %952 = vmatpush.msra.mxu0 0.0
      %953 = vmatpush.msra.mxu0 0.0
      %954 = vmatpush.msra.mxu0 0.0
      %955 = vmatpush.msra.mxu0 0.0
      %956 = vmatpush.msra.mxu0 0.0
      %957 = vmatpush.msra.mxu0 0.0
      %958 = vmatpush.msra.mxu0 0.0
      %959 = vmatpush.msra.mxu0 0.0
      %960 = vmatpush.msra.mxu0 0.0
      %961 = vmatpush.msra.mxu0 0.0
      %962 = vmatpush.msra.mxu0 0.0
      %963 = vmatpush.msra.mxu0 0.0
      %964 = vmatpush.msra.mxu0 %v908
      %965 = vmatmul.f32.gmra.mxu0 %v944
      %v966 = vpop.f32.mrf.mxu0
      %v967 = vadd.f32 0.0, %v966
      %968 = vmatmul.f32.gmra.mxu0 %v947
      %v969 = vpop.f32.mrf.mxu0
      %v970 = vadd.f32 0.0, %v969
      %971 = vdwg.mxu0
      %v972 = vsel %vm427, %v967, -inf
      %v973 = vsel %vm427, %v970, -inf
      %v974 = vmax.f32 %v972, %v973
      %v975 = vrot.slane %v974, 4
      %v976 = vmax.f32 %v974, %v975
      %v977 = vrot.slane %v976, 2
      %v978 = vmax.f32 %v976, %v977
      %v979 = vrot.slane %v978, 1
      %v980 = vmax.f32 %v978, %v979
      %v981 = vsub.f32 %v967, %v980
      %v982 = vsub.f32 %v970, %v980
      %v983 = vmul.f32 %v981, 1.442695
      %v984 = vpow.pop %v983
      %v985 = vmul.f32 %v982, 1.442695
      %v986 = vpow.pop %v985
      %v987 = vsel %vm427, %v984, 0.0
      %v988 = vsel %vm427, %v986, 0.0
      %v989 = vadd.f32 %v987, %v988
      %v990 = vrot.slane %v989, 4
      %v991 = vadd.f32 %v989, %v990
      %v992 = vrot.slane %v991, 2
      %v993 = vadd.f32 %v991, %v992
      %v994 = vrot.slane %v993, 1
      %v995 = vadd.f32 %v993, %v994
      %v997 = vsel %vm427, %v910, 0
      %999 = vmatpush.msra.mxu0 0.0
      %1000 = vmatpush.msra.mxu0 0.0
      %1001 = vmatpush.msra.mxu0 0.0
      %1002 = vmatpush.msra.mxu0 0.0
      %1003 = vmatpush.msra.mxu0 0.0
      %1004 = vmatpush.msra.mxu0 0.0
      %1005 = vmatpush.msra.mxu0 0.0
      %1006 = vmatpush.msra.mxu0 0.0
      %1007 = vmatpush.msra.mxu0 0.0
      %1008 = vmatpush.msra.mxu0 0.0
      %1009 = vmatpush.msra.mxu0 0.0
      %1010 = vmatpush.msra.mxu0 0.0
      %1011 = vmatpush.msra.mxu0 0.0
      %1012 = vmatpush.msra.mxu0 0.0
      %1013 = vmatpush.msra.mxu0 %v986
      %1014 = vmatpush.msra.mxu0 %v984
      %1015 = vmatmul.f32.gmra.mxu0 %v997
      %v1016 = vpop.f32.mrf.mxu0
      %v1017 = vadd.f32 0.0, %v1016
      %1018 = vdwg.mxu0
      %v1019 = vrcp.pop %v995
      %v1020 = vmul.f32 %v1017, %v1019
      %1021 = vst.msk [vmem:[#allocation4 + $0x18] sm:$0xff] %vm427, %v1020
      %v1022 = vld [vmem:[%s6] sm:$0xff]
      %v1023 = vld [vmem:[%s6 + $0x8] sm:$0xff]
      %v1024 = vld [vmem:[%s6 + $0x10] sm:$0xff]
      %v1025 = vld [vmem:[%s6 + $0x18] sm:$0xff]
      %v1026 = vld [vmem:[%s342] sm:$0xff]
      %v1027 = vld [vmem:[%s342 + $0x8] sm:$0xff]
      %v1028 = vld [vmem:[%s342 + $0x10] sm:$0xff]
      %v1029 = vld [vmem:[%s342 + $0x18] sm:$0xff]
      %v1030 = vld [vmem:[%s7] sm:$0xff]
      %v1031 = vld [vmem:[%s7 + $0x8] sm:$0xff]
      %v1032 = vld [vmem:[%s7 + $0x10] sm:$0xff]
      %v1033 = vld [vmem:[%s7 + $0x18] sm:$0xff]
      %v1034 = vld [vmem:[#allocation4] sm:$0xff]
      %v1035 = vld [vmem:[#allocation4 + $0x8] sm:$0xff]
      %v1036 = vld [vmem:[#allocation4 + $0x10] sm:$0xff]
      %v1037 = vld [vmem:[#allocation4 + $0x18] sm:$0xff]
      %v1039 = vsel %vm385, %v1030, 0
      %v1042 = vsel %vm385, %v1031, 0
      %v1045 = vsel %vm385, %v1032, 0
      %v1048 = vsel %vm385, %v1033, 0
      %1050 = vmatpush.msra.mxu0 0.0
      %1051 = vmatpush.msra.mxu0 0.0
      %1052 = vmatpush.msra.mxu0 0.0
      %1053 = vmatpush.msra.mxu0 0.0
      %1054 = vmatpush.msra.mxu0 0.0
      %1055 = vmatpush.msra.mxu0 0.0
      %1056 = vmatpush.msra.mxu0 0.0
      %1057 = vmatpush.msra.mxu0 0.0
      %1058 = vmatpush.msra.mxu0 0.0
      %1059 = vmatpush.msra.mxu0 0.0
      %1060 = vmatpush.msra.mxu0 0.0
      %1061 = vmatpush.msra.mxu0 0.0
      %1062 = vmatpush.msra.mxu0 %v1037
      %1063 = vmatpush.msra.mxu0 %v1036
      %1064 = vmatpush.msra.mxu0 %v1035
      %1065 = vmatpush.msra.mxu0 %v1034
      %1066 = vmatmul.f32.gmra.mxu0 %v1039
      %v1067 = vpop.f32.mrf.mxu0
      %v1068 = vadd.f32 0.0, %v1067
      %1069 = vmatmul.f32.gmra.mxu0 %v1042
      %v1070 = vpop.f32.mrf.mxu0
      %v1071 = vadd.f32 0.0, %v1070
      %1072 = vmatmul.f32.gmra.mxu0 %v1045
      %v1073 = vpop.f32.mrf.mxu0
      %v1074 = vadd.f32 0.0, %v1073
      %1075 = vmatmul.f32.gmra.mxu0 %v1048
      %v1076 = vpop.f32.mrf.mxu0
      %v1077 = vadd.f32 0.0, %v1076
      %1078 = vdwg.mxu0
      %v1080 = vsel %vm385, %v1022, 0
      %v1083 = vsel %vm385, %v1023, 0
      %v1086 = vsel %vm385, %v1024, 0
      %v1089 = vsel %vm385, %v1025, 0
      %1091 = vmatpush.msra.mxu0 0.0
      %1092 = vmatpush.msra.mxu0 0.0
      %1093 = vmatpush.msra.mxu0 0.0
      %1094 = vmatpush.msra.mxu0 0.0
      %1095 = vmatpush.msra.mxu0 0.0
      %1096 = vmatpush.msra.mxu0 0.0
      %1097 = vmatpush.msra.mxu0 0.0
      %1098 = vmatpush.msra.mxu0 0.0
      %1099 = vmatpush.msra.mxu0 0.0
      %1100 = vmatpush.msra.mxu0 0.0
      %1101 = vmatpush.msra.mxu0 0.0
      %1102 = vmatpush.msra.mxu0 0.0
      %1103 = vmatpush.msra.mxu0 %v1029
      %1104 = vmatpush.msra.mxu0 %v1028
      %1105 = vmatpush.msra.mxu0 %v1027
      %1106 = vmatpush.msra.mxu0 %v1026
      %1107 = vmatmul.f32.gmra.mxu0 %v1080
      %v1108 = vpop.f32.mrf.mxu0
      %v1109 = vadd.f32 %v1068, %v1108
      %1110 = vmatmul.f32.gmra.mxu0 %v1083
      %v1111 = vpop.f32.mrf.mxu0
      %v1112 = vadd.f32 %v1071, %v1111
      %1113 = vmatmul.f32.gmra.mxu0 %v1086
      %v1114 = vpop.f32.mrf.mxu0
      %v1115 = vadd.f32 %v1074, %v1114
      %1116 = vmatmul.f32.gmra.mxu0 %v1089
      %v1117 = vpop.f32.mrf.mxu0
      %v1118 = vadd.f32 %v1077, %v1117
      %1119 = vdwg.mxu0
      %v1120 = vld [vmem:[%s8] sm:$0xff]
      %v1121 = vld [vmem:[%s8 + $0x8] sm:$0xff]
      %v1122 = vld [vmem:[%s8 + $0x10] sm:$0xff]
      %v1123 = vld [vmem:[%s8 + $0x18] sm:$0xff]
      %1125 = vset.pattern.permute.xlu0 0
      %1126 = vperm.xlu0 %1125, %v1120
      %v1127 = vpop.permute.xlu0 %1126
      %1130 = vset.pattern.permute.xlu0 0
      %1131 = vperm.xlu0 %1130, %v1121
      %v1132 = vpop.permute.xlu0 %1131
      %1135 = vset.pattern.permute.xlu0 0
      %1136 = vperm.xlu0 %1135, %v1122
      %v1137 = vpop.permute.xlu0 %1136
      %1140 = vset.pattern.permute.xlu0 0
      %1141 = vperm.xlu0 %1140, %v1123
      %v1142 = vpop.permute.xlu0 %1141
      %v1144 = vadd.f32 %v1109, %v1127
      %v1145 = vadd.f32 %v1112, %v1132
      %v1146 = vadd.f32 %v1115, %v1137
      %v1147 = vadd.f32 %v1118, %v1142
      %1148 = vst.msk [vmem:[%s352] sm:$0xff] %vm427, %v1144
      %1149 = vst.msk [vmem:[%s352 + $0x8] sm:$0xff] %vm427, %v1145
      %1150 = vst.msk [vmem:[%s352 + $0x10] sm:$0xff] %vm427, %v1146
      %1151 = vst.msk [vmem:[%s352 + $0x18] sm:$0xff] %vm427, %v1147
      %p1152 = scmp.lt.s32.totalorder %s20, 1
      %s1153 = scalar_select %p1152, %s20, 1
      %s1154 = smul.addr %s1153, 4
      %s1155 = smul.addr %s1154, 8
      %s1156 = scalar_lea.vmem %s9, %s1155
      // Predicated region
      $region57: #{tpu_custom_call.1} parent=55 // pred_check
        %p1157 = pneg %p237
      $region58: #{tpu_custom_call.1} parent=55 // pred_check_branch
        %1159 = sbr.rel (%p1157) target = $region60
      $region59: #{tpu_custom_call.1} parent=55 // pred_region
        _
      $region60: #{tpu_custom_call.1} parent=55 // pred_fallthru
        _
    $region56: #{tpu_custom_call.1} parent=5 // pred_fallthru
      _
    %p1160 = scmp.le.s32.totalorder 2, %s15
    // Predicated region
    $region61: #{tpu_custom_call.1} parent=5 // pred_check
      %p1161 = pneg %p1160
    $region62: #{tpu_custom_call.1} parent=5 // pred_check_branch
      %1163 = sbr.rel (%p1161) target = $region64
    $region63: #{tpu_custom_call.1} parent=5 // pred_region
      %s1164 = ssub.s32 %s15, 2
      // Predicated region
      $region65: #{tpu_custom_call.1} parent=63 // pred_check
        %p1165 = pneg %p243
      $region66: #{tpu_custom_call.1} parent=63 // pred_check_branch
        %1167 = sbr.rel (%p1165) target = $region68
      $region67: #{tpu_custom_call.1} parent=63 // pred_region
        %p1168 = scmp.lt.s32.totalorder %s21, 1
        %s1169 = scalar_select %p1168, %s21, 1
        %s1170 = smul.addr %s1169, 4
        %s1171 = smul.addr %s1170, 8
        %s1172 = scalar_lea.vmem %s9, %s1171
      $region68: #{tpu_custom_call.1} parent=63 // pred_fallthru
        _
    $region64: #{tpu_custom_call.1} parent=5 // pred_fallthru
      _
  $region6: #{tpu_custom_call.1} parent=0 // loop_footer
    %s19 = sadd.s32 1, %s15
  $region7: #{tpu_custom_call.1} parent=0 // loop_footer_branch
    %14 = sbr.rel target = $region3
  $region8: #{tpu_custom_call.1} parent=0 // loop_exit
    _

</llo_original>
